<compile_context>
chip_gen: v7x
topology: tpu7x:2x2x1
jax: 0.10.0
libtpu: 0.0.40
codegen_flags: <defaults>
</compile_context>

<pallas_src>
import functools

import jax
import jax.numpy as jnp
from jax.experimental import pallas as pl
from jax.experimental.pallas import tpu as pltpu


def _mha_random_kernel(bb, H, S, D, DV, use_bf16,
                       mask_ref, rand_ref, q_ref, v_ref,
                       wv_ref, fc_ref, gamma_ref, beta_ref,
                       out_ref, attn_ref):
    """One batch block (bb batch elements) per grid step.

    mask_ref : (bb, S, S)    int32   (mask == 0 -> -1e9 fill)
    rand_ref : (bb, H, S, S) f32     learned random attention logits
    q_ref    : (bb, S, D)    f32     residual input
    v_ref    : (bb, S, D)    f32     value input
    wv_ref   : (H, D, DV)    f32     w_vs weight, head-major
    fc_ref   : (H, DV, D)    f32     fc weight, head-major
    gamma_ref, beta_ref : (1, D)     layernorm affine params
    out_ref  : (bb, S, D)    f32
    attn_ref : (bb, H, S, S) f32
    """
    # --- masked softmax over the random attention logits (all f32) ---
    # mask compare hoisted: one (bb,S,S) additive bias shared across heads.
    bias = jnp.where(mask_ref[...] == 0, -1e9, 0.0).astype(jnp.float32)
    scores = rand_ref[...] + bias[:, None, :, :]                # (bb,H,S,S)
    scores = scores - jnp.max(scores, axis=-1, keepdims=True)
    e = jnp.exp(scores)
    denom = jnp.sum(e, axis=-1, keepdims=True)
    attn = e * pl.reciprocal(denom, approx=False)               # exact 1/x
    attn_ref[...] = attn                                        # f32 store

    # --- head-batched matmuls (no per-head loop, no concatenate) ---
    # All reshapes below only merge/split *leading* dims (last two dims are
    # untouched), so they are layout-preserving (no relayout copies).
    G = bb * H
    mm_dtype = jnp.bfloat16 if use_bf16 else jnp.float32

    v_g = jnp.broadcast_to(v_ref[...][:, None], (bb, H, S, D)).reshape(G, S, D)
    wv_g = jnp.broadcast_to(wv_ref[...][None], (bb, H, D, DV)).reshape(G, D, DV)
    fc_g = jnp.broadcast_to(fc_ref[...][None], (bb, H, DV, D)).reshape(G, DV, D)
    attn_g = attn.reshape(G, S, S)

    # value projection per head:      (G,S,D) x (G,D,DV) -> (G,S,DV)
    vp = jnp.einsum('gsd,gdk->gsk',
                    v_g.astype(mm_dtype), wv_g.astype(mm_dtype),
                    preferred_element_type=jnp.float32)
    # attention-weighted values:      (G,S,S) x (G,S,DV) -> (G,S,DV)
    ctx = jnp.einsum('gqk,gkv->gqv',
                     attn_g.astype(mm_dtype), vp.astype(mm_dtype),
                     preferred_element_type=jnp.float32)
    # per-head output projection:     (G,S,DV) x (G,DV,D) -> (G,S,D)
    oh = jnp.einsum('gsv,gvd->gsd',
                    ctx.astype(mm_dtype), fc_g.astype(mm_dtype),
                    preferred_element_type=jnp.float32)

    # sum over heads (leading-axis reduction = cheap VALU adds) + residual.
    o = oh.reshape(bb, H, S, D).sum(axis=1) + q_ref[...]        # (bb,S,D)

    # --- layernorm(eps=1e-6) with affine params, all f32 ---
    mu = jnp.mean(o, axis=-1, keepdims=True)
    var = jnp.mean(jnp.square(o - mu), axis=-1, keepdims=True)
    normed = (o - mu) * jax.lax.rsqrt(var + 1e-6)
    out_ref[...] = normed * gamma_ref[...] + beta_ref[...]


def mha_random_forward(q, v, mask, rand_attn, w_vs, fc_w, gamma, beta,
                       *, batch_block=None, use_bf16_matmul=False):
    """q, v: (B, S, D); mask: (B, S, S) int32; rand_attn: (B, H, S, S).

    w_vs: (H*DV, D)  [nn.Linear(d_model, n_head*d_v).weight]
    fc_w: (D, H*DV)  [nn.Linear(n_head*d_v, d_model).weight]
    """
    B, S, D = q.shape
    H = rand_attn.shape[1]
    HDV = w_vs.shape[0]
    DV = HDV // H

    # Head-major weights so attn@v and the output projection run as
    # head-batched matmuls with zero in-kernel transposes.
    wv_heads = jnp.asarray(w_vs, jnp.float32).reshape(H, DV, D).transpose(0, 2, 1)  # (H,D,DV)
    fc_heads = jnp.asarray(fc_w, jnp.float32).T.reshape(H, DV, D)                   # (H,DV,D)
    gamma2 = jnp.asarray(gamma, jnp.float32).reshape(1, D)
    beta2 = jnp.asarray(beta, jnp.float32).reshape(1, D)
    mask = jnp.asarray(mask, jnp.int32)

    # Batch block: amortize per-grid-step overhead, but default to keeping
    # >= 2 parallel grid steps so both v7x TensorCores stay busy.
    if batch_block is None:
        batch_block = max(1, B // 2)
    bb = max(1, min(int(batch_block), B))
    while B % bb:
        bb -= 1

    # VMEM sizing (v7x has only 64 MiB/TC): double-buffered per-step blocks
    # + weights (constant index_map -> fetched once by the pipeline) + slack.
    block_bytes = 4 * bb * (S * S + 2 * H * S * S + 3 * S * D)
    weight_bytes = 4 * (2 * H * DV * D + 2 * D)
    needed = 2 * block_bytes + 2 * weight_bytes + (8 << 20)
    if needed > (48 << 20):
        raise ValueError("blocks too large for v7x VMEM; reduce batch_block "
                         "or add a sequence-tile grid axis")
    vmem_limit = int(min(max(needed, 32 << 20), 48 << 20))

    kernel = functools.partial(_mha_random_kernel, bb, H, S, D, DV,
                               bool(use_bf16_matmul))

    out, attn = pl.pallas_call(
        kernel,
        out_shape=(jax.ShapeDtypeStruct((B, S, D), jnp.float32),
                   jax.ShapeDtypeStruct((B, H, S, S), jnp.float32)),
        grid_spec=pltpu.PrefetchScalarGridSpec(
            num_scalar_prefetch=0,
            grid=(B // bb,),
            in_specs=[
                pl.BlockSpec((bb, S, S), lambda b: (b, 0, 0)),        # mask
                pl.BlockSpec((bb, H, S, S), lambda b: (b, 0, 0, 0)),  # rand_attn
                pl.BlockSpec((bb, S, D), lambda b: (b, 0, 0)),        # q (residual)
                pl.BlockSpec((bb, S, D), lambda b: (b, 0, 0)),        # v
                pl.BlockSpec((H, D, DV), lambda b: (0, 0, 0)),        # w_vs head-major
                pl.BlockSpec((H, DV, D), lambda b: (0, 0, 0)),        # fc head-major
                pl.BlockSpec((1, D), lambda b: (0, 0)),               # gamma
                pl.BlockSpec((1, D), lambda b: (0, 0)),               # beta
            ],
            out_specs=[
                pl.BlockSpec((bb, S, D), lambda b: (b, 0, 0)),
                pl.BlockSpec((bb, H, S, S), lambda b: (b, 0, 0, 0)),
            ],
        ),
        compiler_params=pltpu.CompilerParams(
            dimension_semantics=("parallel",),
            vmem_limit_bytes=vmem_limit),
    )(mask, rand_attn, q, v, wv_heads, fc_heads, gamma2, beta2)
    return out, attn


def reference_forward(q, v, mask, rand_attn, w_vs, fc_w, gamma, beta):
    """Pure-JAX reference mirroring the PyTorch module (eval mode), f32."""
    B, S, D = q.shape
    H = rand_attn.shape[1]
    DV = w_vs.shape[0] // H
    hp = jax.lax.Precision.HIGHEST
    vp = jnp.einsum('bsd,ed->bse', v, w_vs, precision=hp)
    vp = vp.reshape(B, S, H, DV).transpose(0, 2, 1, 3)            # (B,H,S,DV)
    scores = jnp.where(mask[:, None, :, :] == 0, -1e9, rand_attn)
    attn = jax.nn.softmax(scores, axis=-1)
    ctx = jnp.einsum('bhqk,bhkv->bhqv', attn, vp, precision=hp)
    ctx = ctx.transpose(0, 2, 1, 3).reshape(B, S, H * DV)
    o = jnp.einsum('bse,de->bsd', ctx, fc_w, precision=hp) + q
    mu = o.mean(-1, keepdims=True)
    var = ((o - mu) ** 2).mean(-1, keepdims=True)
    out = (o - mu) / jnp.sqrt(var + 1e-6) * gamma + beta
    return out, attn


if __name__ == "__main__":
    # Module hyperparams. Chosen small but TPU-tile-aligned (per perf review:
    # lane-dense I/O) — max_seq_len = d_model = 128, n_head=2, d_k=32, d_v=64.
    B, H, S, D, DK, DV = 2, 2, 128, 128, 32, 64

    key = jax.random.PRNGKey(0)
    k_q, k_v, k_wv, k_fc, k_ra = jax.random.split(key, 5)

    # inputs (q, k, v all (B, S, D); k is unused for attn_type='random')
    q_in = jax.random.normal(k_q, (B, S, D), jnp.float32)
    v_in = jax.random.normal(k_v, (B, S, D), jnp.float32)

    # deterministic parameter init
    w_vs = jax.random.normal(k_wv, (H * DV, D), jnp.float32) * 0.05   # (n_head*d_v, d_model)
    fc_w = jax.random.normal(k_fc, (D, H * DV), jnp.float32) * 0.05   # (d_model, n_head*d_v)
    rand_attn = jax.random.normal(k_ra, (B, H, S, S), jnp.float32)    # RandomAttention.random_attn
    gamma = jnp.ones((D,), jnp.float32)                               # LayerNorm defaults
    beta = jnp.zeros((D,), jnp.float32)

    # causal mask (B, S, S), 0 -> masked out
    mask = jnp.tril(jnp.ones((S, S), jnp.int32))[None].repeat(B, axis=0)

    out_r, attn_r = reference_forward(q_in, v_in, mask, rand_attn, w_vs, fc_w, gamma, beta)

    # 1) f32, one batch element per step (2 parallel steps -> both v7x TCs busy)
    out, attn = mha_random_forward(q_in, v_in, mask, rand_attn, w_vs, fc_w, gamma, beta)
    out = jax.block_until_ready(out)
    attn = jax.block_until_ready(attn)
    assert out.shape == (B, S, D) and attn.shape == (B, H, S, S)
    assert jnp.allclose(attn, attn_r, atol=1e-5, rtol=1e-5), "attn mismatch (f32)"
    assert jnp.allclose(out, out_r, atol=1e-4, rtol=1e-4), "output mismatch (f32)"

    # 2) batch-blocked variant (whole batch in one grid step) — amortizes
    #    per-step overhead when B is large.
    out2, attn2 = mha_random_forward(q_in, v_in, mask, rand_attn, w_vs, fc_w,
                                     gamma, beta, batch_block=B)
    out2 = jax.block_until_ready(out2)
    assert jnp.allclose(attn2, attn_r, atol=1e-5, rtol=1e-5), "attn mismatch (bb=B)"
    assert jnp.allclose(out2, out_r, atol=1e-4, rtol=1e-4), "output mismatch (bb=B)"

    # 3) bf16 MXU operands with f32 accumulation (v6e/v7x throughput path).
    #    Softmax stays f32 so the returned attn still matches tightly; the
    #    output tolerance is loosened for the bf16 operand rounding.
    out3, attn3 = mha_random_forward(q_in, v_in, mask, rand_attn, w_vs, fc_w,
                                     gamma, beta, use_bf16_matmul=True)
    out3 = jax.block_until_ready(out3)
    assert jnp.allclose(attn3, attn_r, atol=1e-5, rtol=1e-5), "attn mismatch (bf16)"
    assert jnp.allclose(out3, out_r, atol=2e-2, rtol=2e-2), "output mismatch (bf16)"

    print("KERNEL_OK")
</pallas_src>

<mosaic_0001>
module attributes {stable_mosaic.version = 11 : i64} {
  func.func @_mha_random_kernel(%arg0: i32, %arg1: memref<1x128x128xi32, #tpu.memory_space<vmem>>, %arg2: memref<1x2x128x128xf32, #tpu.memory_space<vmem>>, %arg3: memref<1x128x128xf32, #tpu.memory_space<vmem>>, %arg4: memref<1x128x128xf32, #tpu.memory_space<vmem>>, %arg5: memref<2x128x64xf32, #tpu.memory_space<vmem>>, %arg6: memref<2x64x128xf32, #tpu.memory_space<vmem>>, %arg7: memref<1x128xf32, #tpu.memory_space<vmem>>, %arg8: memref<1x128xf32, #tpu.memory_space<vmem>>, %arg9: memref<1x128x128xf32, #tpu.memory_space<vmem>>, %arg10: memref<1x2x128x128xf32, #tpu.memory_space<vmem>>) attributes {dimension_semantics = [#tpu.dimension_semantics<parallel>], iteration_bounds = array<i64: 2>, scalar_prefetch = 0 : i64, scratch_operands = 0 : i64, tpu.core_type = #tpu.core_type<tc>, window_params = [{transform_indices = @transform_0, window_bounds = array<i64: 1, 128, 128>}, {transform_indices = @transform_1, window_bounds = array<i64: 1, 2, 128, 128>}, {transform_indices = @transform_2, window_bounds = array<i64: 1, 128, 128>}, {transform_indices = @transform_3, window_bounds = array<i64: 1, 128, 128>}, {pipeline_mode = #tpu.pipeline_mode<synchronous>, transform_indices = @transform_4, window_bounds = array<i64: 2, 128, 64>}, {pipeline_mode = #tpu.pipeline_mode<synchronous>, transform_indices = @transform_5, window_bounds = array<i64: 2, 64, 128>}, {pipeline_mode = #tpu.pipeline_mode<synchronous>, transform_indices = @transform_6, window_bounds = array<i64: 1, 128>}, {pipeline_mode = #tpu.pipeline_mode<synchronous>, transform_indices = @transform_7, window_bounds = array<i64: 1, 128>}, {transform_indices = @transform_8, window_bounds = array<i64: 1, 128, 128>}, {transform_indices = @transform_9, window_bounds = array<i64: 1, 2, 128, 128>}]} {
    %c0 = arith.constant 0 : index
    %c0_0 = arith.constant 0 : index
    %c0_1 = arith.constant 0 : index
    %0 = vector.load %arg1[%c0, %c0_0, %c0_1] : memref<1x128x128xi32, #tpu.memory_space<vmem>>, vector<1x128x128xi32>
    %c0_i32 = arith.constant 0 : i32
    %1 = vector.broadcast %c0_i32 : i32 to vector<1x128x128xi32>
    %2 = arith.cmpi eq, %0, %1 : vector<1x128x128xi32>
    %cst = arith.constant -1.000000e+09 : f32
    %cst_2 = arith.constant 0.000000e+00 : f32
    %3 = vector.broadcast %cst : f32 to vector<1x128x128xf32>
    %4 = vector.broadcast %cst_2 : f32 to vector<1x128x128xf32>
    %5 = arith.select %2, %3, %4 : vector<1x128x128xi1>, vector<1x128x128xf32>
    %c0_3 = arith.constant 0 : index
    %c0_4 = arith.constant 0 : index
    %c0_5 = arith.constant 0 : index
    %c0_6 = arith.constant 0 : index
    %6 = vector.load %arg2[%c0_3, %c0_4, %c0_5, %c0_6] : memref<1x2x128x128xf32, #tpu.memory_space<vmem>>, vector<1x2x128x128xf32>
    %7 = vector.shape_cast %5 : vector<1x128x128xf32> to vector<1x1x128x128xf32>
    %8 = vector.broadcast %7 : vector<1x1x128x128xf32> to vector<1x2x128x128xf32>
    %9 = arith.addf %6, %8 : vector<1x2x128x128xf32>
    %cst_7 = arith.constant dense<0xFF800000> : vector<1x2x128xf32>
    %10 = vector.multi_reduction <maximumf>, %9, %cst_7 [3] : vector<1x2x128x128xf32> to vector<1x2x128xf32>
    %11 = vector.shape_cast %10 : vector<1x2x128xf32> to vector<1x2x128x1xf32>
    %12 = vector.broadcast %11 : vector<1x2x128x1xf32> to vector<1x2x128x128xf32>
    %13 = arith.subf %9, %12 : vector<1x2x128x128xf32>
    %14 = math.exp %13 : vector<1x2x128x128xf32>
    %cst_8 = arith.constant dense<0.000000e+00> : vector<1x2x128xf32>
    %15 = vector.multi_reduction <add>, %14, %cst_8 [3] : vector<1x2x128x128xf32> to vector<1x2x128xf32>
    %16 = vector.shape_cast %15 : vector<1x2x128xf32> to vector<1x2x128x1xf32>
    %17 = tpu.reciprocal %16 : vector<1x2x128x1xf32> -> vector<1x2x128x1xf32>
    %18 = vector.broadcast %17 : vector<1x2x128x1xf32> to vector<1x2x128x128xf32>
    %19 = arith.mulf %14, %18 : vector<1x2x128x128xf32>
    %c0_9 = arith.constant 0 : index
    %c0_10 = arith.constant 0 : index
    %c0_11 = arith.constant 0 : index
    %c0_12 = arith.constant 0 : index
    %20 = vector.load %arg10[%c0_9, %c0_10, %c0_11, %c0_12] : memref<1x2x128x128xf32, #tpu.memory_space<vmem>>, vector<1x2x128x128xf32>
    tpu.vector_store %arg10[%c0_9, %c0_10, %c0_11, %c0_12], %19 {strides = array<i32>} : memref<1x2x128x128xf32, #tpu.memory_space<vmem>>, vector<1x2x128x128xf32>,
    %c0_13 = arith.constant 0 : index
    %c0_14 = arith.constant 0 : index
    %c0_15 = arith.constant 0 : index
    %21 = vector.load %arg4[%c0_13, %c0_14, %c0_15] : memref<1x128x128xf32, #tpu.memory_space<vmem>>, vector<1x128x128xf32>
    %22 = vector.shape_cast %21 : vector<1x128x128xf32> to vector<1x1x128x128xf32>
    %23 = vector.shape_cast %22 : vector<1x1x128x128xf32> to vector<1x1x128x128xf32>
    %24 = vector.broadcast %23 : vector<1x1x128x128xf32> to vector<1x2x128x128xf32>
    %25 = vector.shape_cast %24 : vector<1x2x128x128xf32> to vector<2x128x128xf32>
    %c0_16 = arith.constant 0 : index
    %c0_17 = arith.constant 0 : index
    %c0_18 = arith.constant 0 : index
    %26 = vector.load %arg5[%c0_16, %c0_17, %c0_18] : memref<2x128x64xf32, #tpu.memory_space<vmem>>, vector<2x128x64xf32>
    %27 = vector.shape_cast %26 : vector<2x128x64xf32> to vector<1x2x128x64xf32>
    %28 = vector.shape_cast %27 : vector<1x2x128x64xf32> to vector<2x128x64xf32>
    %c0_19 = arith.constant 0 : index
    %c0_20 = arith.constant 0 : index
    %c0_21 = arith.constant 0 : index
    %29 = vector.load %arg6[%c0_19, %c0_20, %c0_21] : memref<2x64x128xf32, #tpu.memory_space<vmem>>, vector<2x64x128xf32>
    %30 = vector.shape_cast %29 : vector<2x64x128xf32> to vector<1x2x64x128xf32>
    %31 = vector.shape_cast %30 : vector<1x2x64x128xf32> to vector<2x64x128xf32>
    %32 = vector.shape_cast %19 : vector<1x2x128x128xf32> to vector<2x128x128xf32>
    "tpu.trace_start"() <{level = 10 : i32, message = "gsd,gdk->gsk"}> : () -> ()
    %cst_22 = arith.constant dense<0.000000e+00> : vector<2x128x64xf32>
    %33 = tpu.matmul %25, %28, %cst_22 {dimension_numbers = #tpu.dot_dimension_numbers<[2], [1], [1], [2], [0, 0, 0, 1, 1, 2], [0], [0]>} : vector<2x128x128xf32>, vector<2x128x64xf32>, vector<2x128x64xf32> -> vector<2x128x64xf32>
    "tpu.trace_stop"() : () -> ()
    "tpu.trace_start"() <{level = 10 : i32, message = "gqk,gkv->gqv"}> : () -> ()
    %cst_23 = arith.constant dense<0.000000e+00> : vector<2x128x64xf32>
    %34 = tpu.matmul %32, %33, %cst_23 {dimension_numbers = #tpu.dot_dimension_numbers<[2], [1], [1], [2], [0, 0, 0, 1, 1, 2], [0], [0]>} : vector<2x128x128xf32>, vector<2x128x64xf32>, vector<2x128x64xf32> -> vector<2x128x64xf32>
    "tpu.trace_stop"() : () -> ()
    "tpu.trace_start"() <{level = 10 : i32, message = "gsv,gvd->gsd"}> : () -> ()
    %cst_24 = arith.constant dense<0.000000e+00> : vector<2x128x128xf32>
    %35 = tpu.matmul %34, %31, %cst_24 {dimension_numbers = #tpu.dot_dimension_numbers<[2], [1], [1], [2], [0, 0, 0, 1, 1, 2], [0], [0]>} : vector<2x128x64xf32>, vector<2x64x128xf32>, vector<2x128x128xf32> -> vector<2x128x128xf32>
    "tpu.trace_stop"() : () -> ()
    %36 = vector.shape_cast %35 : vector<2x128x128xf32> to vector<1x2x128x128xf32>
    %cst_25 = arith.constant dense<0.000000e+00> : vector<1x128x128xf32>
    %37 = vector.multi_reduction <add>, %36, %cst_25 [1] : vector<1x2x128x128xf32> to vector<1x128x128xf32>
    %c0_26 = arith.constant 0 : index
    %c0_27 = arith.constant 0 : index
    %c0_28 = arith.constant 0 : index
    %38 = vector.load %arg3[%c0_26, %c0_27, %c0_28] : memref<1x128x128xf32, #tpu.memory_space<vmem>>, vector<1x128x128xf32>
    %39 = arith.addf %37, %38 : vector<1x128x128xf32>
    %cst_29 = arith.constant dense<0.000000e+00> : vector<1x128xf32>
    %40 = vector.multi_reduction <add>, %39, %cst_29 [2] : vector<1x128x128xf32> to vector<1x128xf32>
    %41 = vector.shape_cast %40 : vector<1x128xf32> to vector<1x128x1xf32>
    %cst_30 = arith.constant 1.280000e+02 : f32
    %42 = vector.broadcast %cst_30 : f32 to vector<1x128x1xf32>
    %43 = arith.divf %41, %42 : vector<1x128x1xf32>
    %44 = vector.broadcast %43 : vector<1x128x1xf32> to vector<1x128x128xf32>
    %45 = arith.subf %39, %44 : vector<1x128x128xf32>
    %46 = arith.mulf %45, %45 : vector<1x128x128xf32>
    %cst_31 = arith.constant dense<0.000000e+00> : vector<1x128xf32>
    %47 = vector.multi_reduction <add>, %46, %cst_31 [2] : vector<1x128x128xf32> to vector<1x128xf32>
    %48 = vector.shape_cast %47 : vector<1x128xf32> to vector<1x128x1xf32>
    %cst_32 = arith.constant 1.280000e+02 : f32
    %49 = vector.broadcast %cst_32 : f32 to vector<1x128x1xf32>
    %50 = arith.divf %48, %49 : vector<1x128x1xf32>
    %51 = vector.broadcast %43 : vector<1x128x1xf32> to vector<1x128x128xf32>
    %52 = arith.subf %39, %51 : vector<1x128x128xf32>
    %cst_33 = arith.constant 9.99999997E-7 : f32
    %53 = vector.broadcast %cst_33 : f32 to vector<1x128x1xf32>
    %54 = arith.addf %50, %53 : vector<1x128x1xf32>
    %55 = math.rsqrt %54 : vector<1x128x1xf32>
    %56 = vector.broadcast %55 : vector<1x128x1xf32> to vector<1x128x128xf32>
    %57 = arith.mulf %52, %56 : vector<1x128x128xf32>
    %c0_34 = arith.constant 0 : index
    %c0_35 = arith.constant 0 : index
    %58 = vector.load %arg7[%c0_34, %c0_35] : memref<1x128xf32, #tpu.memory_space<vmem>>, vector<1x128xf32>
    %59 = vector.shape_cast %58 : vector<1x128xf32> to vector<1x1x128xf32>
    %60 = vector.broadcast %59 : vector<1x1x128xf32> to vector<1x128x128xf32>
    %61 = arith.mulf %57, %60 : vector<1x128x128xf32>
    %c0_36 = arith.constant 0 : index
    %c0_37 = arith.constant 0 : index
    %62 = vector.load %arg8[%c0_36, %c0_37] : memref<1x128xf32, #tpu.memory_space<vmem>>, vector<1x128xf32>
    %63 = vector.shape_cast %62 : vector<1x128xf32> to vector<1x1x128xf32>
    %64 = vector.broadcast %63 : vector<1x1x128xf32> to vector<1x128x128xf32>
    %65 = arith.addf %61, %64 : vector<1x128x128xf32>
    %c0_38 = arith.constant 0 : index
    %c0_39 = arith.constant 0 : index
    %c0_40 = arith.constant 0 : index
    %66 = vector.load %arg9[%c0_38, %c0_39, %c0_40] : memref<1x128x128xf32, #tpu.memory_space<vmem>>, vector<1x128x128xf32>
    tpu.vector_store %arg9[%c0_38, %c0_39, %c0_40], %65 {strides = array<i32>} : memref<1x128x128xf32, #tpu.memory_space<vmem>>, vector<1x128x128xf32>,
    return
  }
  func.func @transform_0(%arg0: i32) -> (i32, i32, i32) {
    %c0_i32 = arith.constant 0 : i32
    %c0_i32_0 = arith.constant 0 : i32
    %c0_i32_1 = arith.constant 0 : i32
    return %arg0, %c0_i32, %c0_i32_0 : i32, i32, i32
  }
  func.func @transform_1(%arg0: i32) -> (i32, i32, i32, i32) {
    %c0_i32 = arith.constant 0 : i32
    %c0_i32_0 = arith.constant 0 : i32
    %c0_i32_1 = arith.constant 0 : i32
    %c0_i32_2 = arith.constant 0 : i32
    return %arg0, %c0_i32, %c0_i32_0, %c0_i32_1 : i32, i32, i32, i32
  }
  func.func @transform_2(%arg0: i32) -> (i32, i32, i32) {
    %c0_i32 = arith.constant 0 : i32
    %c0_i32_0 = arith.constant 0 : i32
    %c0_i32_1 = arith.constant 0 : i32
    return %arg0, %c0_i32, %c0_i32_0 : i32, i32, i32
  }
  func.func @transform_3(%arg0: i32) -> (i32, i32, i32) {
    %c0_i32 = arith.constant 0 : i32
    %c0_i32_0 = arith.constant 0 : i32
    %c0_i32_1 = arith.constant 0 : i32
    return %arg0, %c0_i32, %c0_i32_0 : i32, i32, i32
  }
  func.func @transform_4(%arg0: i32) -> (i32, i32, i32) {
    %c0_i32 = arith.constant 0 : i32
    %c0_i32_0 = arith.constant 0 : i32
    %c0_i32_1 = arith.constant 0 : i32
    %c0_i32_2 = arith.constant 0 : i32
    return %c0_i32, %c0_i32_0, %c0_i32_1 : i32, i32, i32
  }
  func.func @transform_5(%arg0: i32) -> (i32, i32, i32) {
    %c0_i32 = arith.constant 0 : i32
    %c0_i32_0 = arith.constant 0 : i32
    %c0_i32_1 = arith.constant 0 : i32
    %c0_i32_2 = arith.constant 0 : i32
    return %c0_i32, %c0_i32_0, %c0_i32_1 : i32, i32, i32
  }
  func.func @transform_6(%arg0: i32) -> (i32, i32) {
    %c0_i32 = arith.constant 0 : i32
    %c0_i32_0 = arith.constant 0 : i32
    %c0_i32_1 = arith.constant 0 : i32
    return %c0_i32, %c0_i32_0 : i32, i32
  }
  func.func @transform_7(%arg0: i32) -> (i32, i32) {
    %c0_i32 = arith.constant 0 : i32
    %c0_i32_0 = arith.constant 0 : i32
    %c0_i32_1 = arith.constant 0 : i32
    return %c0_i32, %c0_i32_0 : i32, i32
  }
  func.func @transform_8(%arg0: i32) -> (i32, i32, i32) {
    %c0_i32 = arith.constant 0 : i32
    %c0_i32_0 = arith.constant 0 : i32
    %c0_i32_1 = arith.constant 0 : i32
    return %arg0, %c0_i32, %c0_i32_0 : i32, i32, i32
  }
  func.func @transform_9(%arg0: i32) -> (i32, i32, i32, i32) {
    %c0_i32 = arith.constant 0 : i32
    %c0_i32_0 = arith.constant 0 : i32
    %c0_i32_1 = arith.constant 0 : i32
    %c0_i32_2 = arith.constant 0 : i32
    return %arg0, %c0_i32, %c0_i32_0, %c0_i32_1 : i32, i32, i32, i32
  }
}

</mosaic_0001>

<llo_original>
// kernel: tpu_custom_call.1
$region0: #{tpu_custom_call.1}
  #allocation0 [shape = 'u32[]', space=smem, size = 0x4, offset = 0x4, fixed_abs, tag = 'smem constant byte address 0x4 - core index']
  #allocation1 [shape = 'u32[144,128]{1,0:T(1,128)}', space=vmem, size = 0x12000, scoped, tag = 'internal scratch']
  %s0 = inlined_call_operand.vmem [shape: s32[2,128,128], index: 0, kind: input, shape index: {}]
  %s1 = inlined_call_operand.hbm [shape: f32[2,2,128,128], index: 1, kind: input, shape index: {}]
  %s2 = inlined_call_operand.hbm [shape: f32[2,128,128], index: 2, kind: input, shape index: {}]
  %s3 = inlined_call_operand.hbm [shape: f32[2,128,128], index: 3, kind: input, shape index: {}]
  %s4 = inlined_call_operand.vmem [shape: f32[2,128,64], index: 4, kind: input, shape index: {}]
  %s5 = inlined_call_operand.vmem [shape: f32[2,64,128], index: 5, kind: input, shape index: {}]
  %s6 = inlined_call_operand.vmem [shape: f32[1,128], index: 6, kind: input, shape index: {}]
  %s7 = inlined_call_operand.vmem [shape: f32[1,128], index: 7, kind: input, shape index: {}]
  %s8 = inlined_call_operand.hbm [shape: f32[2,128,128], index: 8, kind: output, shape index: {0}]
  %s9 = inlined_call_operand.hbm [shape: f32[2,2,128,128], index: 9, kind: output, shape index: {1}]
  %10 = xla_tuple %s8, %s9
  %s11 = sld [smem:[#allocation0]]
  $region85: #{tpu_custom_call.1} parent=0
    _
  %s13 = ssub.s32 1, %s11
  %s14 = scalar_select 0, %s13, %s11
  $region1: #{tpu_custom_call.1} parent=0
    #allocation2 [shape = 'u8[262144]{0}', space=vmem, size = 0x40000, scoped, tag = 'input window, operand 1']
    #allocation3 [shape = 's32[2]{0}', space=sflag, size = 0x8, scoped, tag = 'scoped memory for tpu_custom_call.1']
    #allocation4 [shape = 's32[2]{0}', space=sflag, size = 0x8, scoped, tag = 'scoped memory for tpu_custom_call.1']
    #allocation5 [shape = 'u8[131072]{0}', space=vmem, size = 0x20000, scoped, tag = 'input window, operand 2']
    #allocation6 [shape = 's32[2]{0}', space=sflag, size = 0x8, scoped, tag = 'scoped memory for tpu_custom_call.1']
    #allocation7 [shape = 'u8[131072]{0}', space=vmem, size = 0x20000, scoped, tag = 'input window, operand 3']
    #allocation8 [shape = 'u8[131072]{0}', space=vmem, size = 0x20000, scoped, tag = 'output window, operand 0']
    #allocation9 [shape = 'u8[262144]{0}', space=vmem, size = 0x40000, scoped, tag = 'output window, operand 1']
    #allocation10 [shape = 's32[2]{0}', space=sflag, size = 0x8, scoped, tag = 'scoped memory for tpu_custom_call.1']
    %15 = vsyncpa [#allocation3], 0
    %s16 = scalar_lea.sflag [#allocation3], 1
    %17 = vsyncpa %s16, 0
    %18 = vsyncpa [#allocation6], 0
    %s19 = scalar_lea.sflag [#allocation6], 1
    %20 = vsyncpa %s19, 0
    %21 = vsyncpa [#allocation4], 0
    %s22 = scalar_lea.sflag [#allocation4], 1
    %23 = vsyncpa %s22, 0
    %24 = vsyncpa [#allocation10], 0
    %s25 = scalar_lea.sflag [#allocation10], 1
    %26 = vsyncpa %s25, 0
    loop: start=0, step=1, limit=4
    $region2: #{tpu_custom_call.1} parent=1 // loop_pre_header
      _
    $region3: #{tpu_custom_call.1} parent=1 // loop_header
      %s28 = sphi 0, %s32
      %p29 = scmp.ge.s32.totalorder %s28, 4
      %s38 = sphi 0, %s40
      %s41 = sphi 0, %s38
      %s42 = sphi 0, %s41
      %s58 = sphi 0, %s42
      %s64 = sphi 0, %s66
      %s67 = sphi 0, %s64
      %s68 = sphi 0, %s67
      %s84 = sphi 0, %s68
      %s90 = sphi 0, %s92
      %s93 = sphi 0, %s90
      %s94 = sphi 0, %s93
      %s110 = sphi 0, %s94
      %s116 = sphi 0, %s118
      %s119 = sphi 0, %s116
      %s120 = sphi 0, %s119
      %s136 = sphi 0, %s120
      %s140 = sphi 0, %s140
      %s142 = sphi 0, %s140
      %s143 = sphi 0, %s142
      %s157 = sphi 0, %s143
      %s161 = sphi 0, %s161
      %s163 = sphi 0, %s161
      %s164 = sphi 0, %s163
      %s178 = sphi 0, %s164
      %s182 = sphi 0, %s182
      %s184 = sphi 0, %s182
      %s185 = sphi 0, %s184
      %s199 = sphi 0, %s185
      %s203 = sphi 0, %s203
      %s205 = sphi 0, %s203
      %s206 = sphi 0, %s205
      %s220 = sphi 0, %s206
      %s226 = sphi 0, %s228
      %s229 = sphi 0, %s226
      %s230 = sphi 0, %s229
      %s246 = sphi 0, %s230
      %s252 = sphi 0, %s254
      %s255 = sphi 0, %s252
      %s256 = sphi 0, %s255
      %s272 = sphi 0, %s256
    $region4: #{tpu_custom_call.1} parent=1 // loop_header_branch
      %31 = sbr.rel (%p29) target = $region8
    $region5: #{tpu_custom_call.1} parent=1 // loop_body
      %s33 = ssub.s32 %s28, 1
      %s34 = ssub.s32 %s28, 2
      %s35 = sadd.s32 %s28, 1
      %s36 = ssub.s32 %s28, %s35
      %p37 = scmp.eq.s32.totalorder %s36, 0
      %s39 = sadd.s32 %s38, 1
      %s40 = scalar_select %p37, %s38, %s39
      %p43 = pneg %p37
      %p44 = scmp.eq.s32.totalorder %s28, 1
      %p45 = por %p43, %p44
      %p46 = scmp.ne.s32.totalorder %s38, %s41
      %p47 = scmp.eq.s32.totalorder %s28, 0
      %p48 = por %p46, %p47
      %p49 = scmp.ne.s32.totalorder %s38, %s41
      %p50 = scmp.eq.s32.totalorder %s33, 1
      %p51 = por %p49, %p50
      %p52 = scmp.ne.s32.totalorder %s41, %s42
      %p53 = scmp.eq.s32.totalorder %s33, 0
      %p54 = por %p52, %p53
      %p55 = scmp.ne.s32.totalorder %s41, %s42
      %p56 = scmp.eq.s32.totalorder %s34, 1
      %p57 = por %p55, %p56
      %p59 = scmp.ne.s32.totalorder %s42, %s58
      %p60 = scmp.eq.s32.totalorder %s34, 0
      %p61 = por %p59, %p60
      %s62 = ssub.s32 %s28, %s35
      %p63 = scmp.eq.s32.totalorder %s62, 0
      %s65 = sadd.s32 %s64, 1
      %s66 = scalar_select %p63, %s64, %s65
      %p69 = pneg %p63
      %p70 = scmp.eq.s32.totalorder %s28, 1
      %p71 = por %p69, %p70
      %p72 = scmp.ne.s32.totalorder %s64, %s67
      %p73 = scmp.eq.s32.totalorder %s28, 0
      %p74 = por %p72, %p73
      %p75 = scmp.ne.s32.totalorder %s64, %s67
      %p76 = scmp.eq.s32.totalorder %s33, 1
      %p77 = por %p75, %p76
      %p78 = scmp.ne.s32.totalorder %s67, %s68
      %p79 = scmp.eq.s32.totalorder %s33, 0
      %p80 = por %p78, %p79
      %p81 = scmp.ne.s32.totalorder %s67, %s68
      %p82 = scmp.eq.s32.totalorder %s34, 1
      %p83 = por %p81, %p82
      %p85 = scmp.ne.s32.totalorder %s68, %s84
      %p86 = scmp.eq.s32.totalorder %s34, 0
      %p87 = por %p85, %p86
      %s88 = ssub.s32 %s28, %s35
      %p89 = scmp.eq.s32.totalorder %s88, 0
      %s91 = sadd.s32 %s90, 1
      %s92 = scalar_select %p89, %s90, %s91
      %p95 = pneg %p89
      %p96 = scmp.eq.s32.totalorder %s28, 1
      %p97 = por %p95, %p96
      %p98 = scmp.ne.s32.totalorder %s90, %s93
      %p99 = scmp.eq.s32.totalorder %s28, 0
      %p100 = por %p98, %p99
      %p101 = scmp.ne.s32.totalorder %s90, %s93
      %p102 = scmp.eq.s32.totalorder %s33, 1
      %p103 = por %p101, %p102
      %p104 = scmp.ne.s32.totalorder %s93, %s94
      %p105 = scmp.eq.s32.totalorder %s33, 0
      %p106 = por %p104, %p105
      %p107 = scmp.ne.s32.totalorder %s93, %s94
      %p108 = scmp.eq.s32.totalorder %s34, 1
      %p109 = por %p107, %p108
      %p111 = scmp.ne.s32.totalorder %s94, %s110
      %p112 = scmp.eq.s32.totalorder %s34, 0
      %p113 = por %p111, %p112
      %s114 = ssub.s32 %s28, %s35
      %p115 = scmp.eq.s32.totalorder %s114, 0
      %s117 = sadd.s32 %s116, 1
      %s118 = scalar_select %p115, %s116, %s117
      %p121 = pneg %p115
      %p122 = scmp.eq.s32.totalorder %s28, 1
      %p123 = por %p121, %p122
      %p124 = scmp.ne.s32.totalorder %s116, %s119
      %p125 = scmp.eq.s32.totalorder %s28, 0
      %p126 = por %p124, %p125
      %p127 = scmp.ne.s32.totalorder %s116, %s119
      %p128 = scmp.eq.s32.totalorder %s33, 1
      %p129 = por %p127, %p128
      %p130 = scmp.ne.s32.totalorder %s119, %s120
      %p131 = scmp.eq.s32.totalorder %s33, 0
      %p132 = por %p130, %p131
      %p133 = scmp.ne.s32.totalorder %s119, %s120
      %p134 = scmp.eq.s32.totalorder %s34, 1
      %p135 = por %p133, %p134
      %p137 = scmp.ne.s32.totalorder %s120, %s136
      %p138 = scmp.eq.s32.totalorder %s34, 0
      %p139 = por %p137, %p138
      %s141 = sadd.s32 %s140, 1
      %p144 = scmp.eq.s32.totalorder %s28, 1
      %p145 = scmp.ne.s32.totalorder %s140, %s142
      %p146 = scmp.eq.s32.totalorder %s28, 0
      %p147 = por %p145, %p146
      %p148 = scmp.ne.s32.totalorder %s140, %s142
      %p149 = scmp.eq.s32.totalorder %s33, 1
      %p150 = por %p148, %p149
      %p151 = scmp.ne.s32.totalorder %s142, %s143
      %p152 = scmp.eq.s32.totalorder %s33, 0
      %p153 = por %p151, %p152
      %p154 = scmp.ne.s32.totalorder %s142, %s143
      %p155 = scmp.eq.s32.totalorder %s34, 1
      %p156 = por %p154, %p155
      %p158 = scmp.ne.s32.totalorder %s143, %s157
      %p159 = scmp.eq.s32.totalorder %s34, 0
      %p160 = por %p158, %p159
      %s162 = sadd.s32 %s161, 1
      %p165 = scmp.eq.s32.totalorder %s28, 1
      %p166 = scmp.ne.s32.totalorder %s161, %s163
      %p167 = scmp.eq.s32.totalorder %s28, 0
      %p168 = por %p166, %p167
      %p169 = scmp.ne.s32.totalorder %s161, %s163
      %p170 = scmp.eq.s32.totalorder %s33, 1
      %p171 = por %p169, %p170
      %p172 = scmp.ne.s32.totalorder %s163, %s164
      %p173 = scmp.eq.s32.totalorder %s33, 0
      %p174 = por %p172, %p173
      %p175 = scmp.ne.s32.totalorder %s163, %s164
      %p176 = scmp.eq.s32.totalorder %s34, 1
      %p177 = por %p175, %p176
      %p179 = scmp.ne.s32.totalorder %s164, %s178
      %p180 = scmp.eq.s32.totalorder %s34, 0
      %p181 = por %p179, %p180
      %s183 = sadd.s32 %s182, 1
      %p186 = scmp.eq.s32.totalorder %s28, 1
      %p187 = scmp.ne.s32.totalorder %s182, %s184
      %p188 = scmp.eq.s32.totalorder %s28, 0
      %p189 = por %p187, %p188
      %p190 = scmp.ne.s32.totalorder %s182, %s184
      %p191 = scmp.eq.s32.totalorder %s33, 1
      %p192 = por %p190, %p191
      %p193 = scmp.ne.s32.totalorder %s184, %s185
      %p194 = scmp.eq.s32.totalorder %s33, 0
      %p195 = por %p193, %p194
      %p196 = scmp.ne.s32.totalorder %s184, %s185
      %p197 = scmp.eq.s32.totalorder %s34, 1
      %p198 = por %p196, %p197
      %p200 = scmp.ne.s32.totalorder %s185, %s199
      %p201 = scmp.eq.s32.totalorder %s34, 0
      %p202 = por %p200, %p201
      %s204 = sadd.s32 %s203, 1
      %p207 = scmp.eq.s32.totalorder %s28, 1
      %p208 = scmp.ne.s32.totalorder %s203, %s205
      %p209 = scmp.eq.s32.totalorder %s28, 0
      %p210 = por %p208, %p209
      %p211 = scmp.ne.s32.totalorder %s203, %s205
      %p212 = scmp.eq.s32.totalorder %s33, 1
      %p213 = por %p211, %p212
      %p214 = scmp.ne.s32.totalorder %s205, %s206
      %p215 = scmp.eq.s32.totalorder %s33, 0
      %p216 = por %p214, %p215
      %p217 = scmp.ne.s32.totalorder %s205, %s206
      %p218 = scmp.eq.s32.totalorder %s34, 1
      %p219 = por %p217, %p218
      %p221 = scmp.ne.s32.totalorder %s206, %s220
      %p222 = scmp.eq.s32.totalorder %s34, 0
      %p223 = por %p221, %p222
      %s224 = ssub.s32 %s28, %s35
      %p225 = scmp.eq.s32.totalorder %s224, 0
      %s227 = sadd.s32 %s226, 1
      %s228 = scalar_select %p225, %s226, %s227
      %p231 = pneg %p225
      %p232 = scmp.eq.s32.totalorder %s28, 1
      %p233 = por %p231, %p232
      %p234 = scmp.ne.s32.totalorder %s226, %s229
      %p235 = scmp.eq.s32.totalorder %s28, 0
      %p236 = por %p234, %p235
      %p237 = scmp.ne.s32.totalorder %s226, %s229
      %p238 = scmp.eq.s32.totalorder %s33, 1
      %p239 = por %p237, %p238
      %p240 = scmp.ne.s32.totalorder %s229, %s230
      %p241 = scmp.eq.s32.totalorder %s33, 0
      %p242 = por %p240, %p241
      %p243 = scmp.ne.s32.totalorder %s229, %s230
      %p244 = scmp.eq.s32.totalorder %s34, 1
      %p245 = por %p243, %p244
      %p247 = scmp.ne.s32.totalorder %s230, %s246
      %p248 = scmp.eq.s32.totalorder %s34, 0
      %p249 = por %p247, %p248
      %s250 = ssub.s32 %s28, %s35
      %p251 = scmp.eq.s32.totalorder %s250, 0
      %s253 = sadd.s32 %s252, 1
      %s254 = scalar_select %p251, %s252, %s253
      %p257 = pneg %p251
      %p258 = scmp.eq.s32.totalorder %s28, 1
      %p259 = por %p257, %p258
      %p260 = scmp.ne.s32.totalorder %s252, %s255
      %p261 = scmp.eq.s32.totalorder %s28, 0
      %p262 = por %p260, %p261
      %p263 = scmp.ne.s32.totalorder %s252, %s255
      %p264 = scmp.eq.s32.totalorder %s33, 1
      %p265 = por %p263, %p264
      %p266 = scmp.ne.s32.totalorder %s255, %s256
      %p267 = scmp.eq.s32.totalorder %s33, 0
      %p268 = por %p266, %p267
      %p269 = scmp.ne.s32.totalorder %s255, %s256
      %p270 = scmp.eq.s32.totalorder %s34, 1
      %p271 = por %p269, %p270
      %p273 = scmp.ne.s32.totalorder %s256, %s272
      %p274 = scmp.eq.s32.totalorder %s34, 0
      %p275 = por %p273, %p274
      %p276 = scmp.le.s32.totalorder 1, %s28
      %p277 = scmp.lt.s32.totalorder %s28, 3
      %p278 = pnand %p276, %p277
      %p279 = pneg %p278
      // Predicated region
      $region9: #{tpu_custom_call.1} parent=5 // pred_check
        _
      $region10: #{tpu_custom_call.1} parent=5 // pred_check_branch
        %281 = sbr.rel (%p278) target = $region12
      $region11: #{tpu_custom_call.1} parent=5 // pred_region
        %s282 = ssub.s32 %s28, 1
        // Predicated region
        $region13: #{tpu_custom_call.1} parent=11 // pred_check
          %p283 = pneg %p153
        $region14: #{tpu_custom_call.1} parent=11 // pred_check_branch
          %285 = sbr.rel (%p283) target = $region16
        $region15: #{tpu_custom_call.1} parent=11 // pred_region
          _
        $region16: #{tpu_custom_call.1} parent=11 // pred_fallthru
          _
        // Predicated region
        $region17: #{tpu_custom_call.1} parent=11 // pred_check
          %p286 = pneg %p174
        $region18: #{tpu_custom_call.1} parent=11 // pred_check_branch
          %288 = sbr.rel (%p286) target = $region20
        $region19: #{tpu_custom_call.1} parent=11 // pred_region
          _
        $region20: #{tpu_custom_call.1} parent=11 // pred_fallthru
          _
        // Predicated region
        $region21: #{tpu_custom_call.1} parent=11 // pred_check
          %p289 = pneg %p195
        $region22: #{tpu_custom_call.1} parent=11 // pred_check_branch
          %291 = sbr.rel (%p289) target = $region24
        $region23: #{tpu_custom_call.1} parent=11 // pred_region
          _
        $region24: #{tpu_custom_call.1} parent=11 // pred_fallthru
          _
        // Predicated region
        $region25: #{tpu_custom_call.1} parent=11 // pred_check
          %p292 = pneg %p216
        $region26: #{tpu_custom_call.1} parent=11 // pred_check_branch
          %294 = sbr.rel (%p292) target = $region28
        $region27: #{tpu_custom_call.1} parent=11 // pred_region
          _
        $region28: #{tpu_custom_call.1} parent=11 // pred_fallthru
          _
      $region12: #{tpu_custom_call.1} parent=5 // pred_fallthru
        _
      %p295 = scmp.lt.s32.totalorder %s28, 2
      // Predicated region
      $region29: #{tpu_custom_call.1} parent=5 // pred_check
        %p296 = pneg %p295
      $region30: #{tpu_custom_call.1} parent=5 // pred_check_branch
        %298 = sbr.rel (%p296) target = $region32
      $region31: #{tpu_custom_call.1} parent=5 // pred_region
        // Predicated region
        $region33: #{tpu_custom_call.1} parent=31 // pred_check
          %p299 = pneg %p48
        $region34: #{tpu_custom_call.1} parent=31 // pred_check_branch
          %301 = sbr.rel (%p299) target = $region36
        $region35: #{tpu_custom_call.1} parent=31 // pred_region
          %p302 = scmp.lt.s32.totalorder %s28, 1
          %s303 = scalar_select %p302, %s28, 1
          %s304 = smul.addr %s303, 16
          %s305 = smul.addr %s304, 8
          %s306 = scalar_lea.vmem %s0, %s305
        $region36: #{tpu_custom_call.1} parent=31 // pred_fallthru
          _
        // Predicated region
        $region37: #{tpu_custom_call.1} parent=31 // pred_check
          %p307 = pneg %p74
        $region38: #{tpu_custom_call.1} parent=31 // pred_check_branch
          %309 = sbr.rel (%p307) target = $region40
        $region39: #{tpu_custom_call.1} parent=31 // pred_region
          %s310 = sand.u32 %s64, 1
          %s311 = scalar_lea.sflag [#allocation3], %s310
          %s312 = sand.u32 %s64, 1
          %s313 = smul.addr %s312, 256
          %s314 = scalar_lea.vmem [#allocation2], %s313
          %s316 = ssub.s32 4096, 4096
          %317 = vsyncadd %s311, %s316
          %s318 = smul.addr %s28, 32
          %s319 = smul.addr %s318, 128
          %s320 = scalar_lea.hbm %s1, %s319
          %s321 = sshll.u32 %s314, 4
          %s322 = int_to_ptr.vmem [resolvable:$true] %s321
          %327 = dma.hbm_to_vmem [thread:$0]  %s320, 4096, %s322, %s311, 128, 128, 8
        $region40: #{tpu_custom_call.1} parent=31 // pred_fallthru
          _
        // Predicated region
        $region41: #{tpu_custom_call.1} parent=31 // pred_check
          %p328 = pneg %p100
        $region42: #{tpu_custom_call.1} parent=31 // pred_check_branch
          %330 = sbr.rel (%p328) target = $region44
        $region43: #{tpu_custom_call.1} parent=31 // pred_region
          %s331 = sand.u32 %s28, 1
          %s332 = scalar_lea.sflag [#allocation6], %s331
          %s333 = sand.u32 %s90, 1
          %s334 = smul.addr %s333, 128
          %s335 = scalar_lea.vmem [#allocation5], %s334
          %s337 = ssub.s32 2048, 2048
          %338 = vsyncadd %s332, %s337
          %s339 = smul.addr %s28, 16
          %s340 = smul.addr %s339, 128
          %s341 = scalar_lea.hbm %s2, %s340
          %s342 = sshll.u32 %s335, 4
          %s343 = int_to_ptr.vmem [resolvable:$true] %s342
          %348 = dma.hbm_to_vmem [thread:$0]  %s341, 2048, %s343, %s332, 128, 128, 8
        $region44: #{tpu_custom_call.1} parent=31 // pred_fallthru
          _
        // Predicated region
        $region45: #{tpu_custom_call.1} parent=31 // pred_check
          %p349 = pneg %p126
        $region46: #{tpu_custom_call.1} parent=31 // pred_check_branch
          %351 = sbr.rel (%p349) target = $region48
        $region47: #{tpu_custom_call.1} parent=31 // pred_region
          %s352 = sand.u32 %s28, 1
          %s353 = scalar_lea.sflag [#allocation6], %s352
          %s354 = sand.u32 %s116, 1
          %s355 = smul.addr %s354, 128
          %s356 = scalar_lea.vmem [#allocation7], %s355
          %s358 = ssub.s32 2048, 2048
          %359 = vsyncadd %s353, %s358
          %s360 = smul.addr %s28, 16
          %s361 = smul.addr %s360, 128
          %s362 = scalar_lea.hbm %s3, %s361
          %s363 = sshll.u32 %s356, 4
          %s364 = int_to_ptr.vmem [resolvable:$true] %s363
          %369 = dma.hbm_to_vmem [thread:$0]  %s362, 2048, %s364, %s353, 128, 128, 8
        $region48: #{tpu_custom_call.1} parent=31 // pred_fallthru
          _
      $region32: #{tpu_custom_call.1} parent=5 // pred_fallthru
        _
      %p370 = scmp.le.s32.totalorder 1, %s28
      %p371 = scmp.lt.s32.totalorder %s28, 3
      %p372 = pnand %p370, %p371
      %p373 = pneg %p372
      // Predicated region
      $region49: #{tpu_custom_call.1} parent=5 // pred_check
        _
      $region50: #{tpu_custom_call.1} parent=5 // pred_check_branch
        %375 = sbr.rel (%p372) target = $region52
      $region51: #{tpu_custom_call.1} parent=5 // pred_region
        %s376 = ssub.s32 %s28, 1
        %s377 = sand.u32 %s67, 1
        %s378 = scalar_lea.sflag [#allocation3], %s377
        %s379 = sand.u32 %s67, 1
        %s380 = smul.addr %s379, 256
        %s381 = scalar_lea.vmem [#allocation2], %s380
        // Predicated region
        $region53: #{tpu_custom_call.1} parent=51 // pred_check
          %p382 = pneg %p80
        $region54: #{tpu_custom_call.1} parent=51 // pred_check_branch
          %384 = sbr.rel (%p382) target = $region56
        $region55: #{tpu_custom_call.1} parent=51 // pred_region
          %385 = dma.done %s378, 4096
        $region56: #{tpu_custom_call.1} parent=51 // pred_fallthru
          _
        %s386 = sand.u32 %s33, 1
        %s387 = scalar_lea.sflag [#allocation6], %s386
        %s388 = sand.u32 %s93, 1
        %s389 = smul.addr %s388, 128
        %s390 = scalar_lea.vmem [#allocation5], %s389
        // Predicated region
        $region57: #{tpu_custom_call.1} parent=51 // pred_check
          %p391 = pneg %p106
        $region58: #{tpu_custom_call.1} parent=51 // pred_check_branch
          %393 = sbr.rel (%p391) target = $region60
        $region59: #{tpu_custom_call.1} parent=51 // pred_region
          %394 = dma.done %s387, 2048
        $region60: #{tpu_custom_call.1} parent=51 // pred_fallthru
          _
        %s395 = sand.u32 %s33, 1
        %s396 = scalar_lea.sflag [#allocation6], %s395
        %s397 = sand.u32 %s119, 1
        %s398 = smul.addr %s397, 128
        %s399 = scalar_lea.vmem [#allocation7], %s398
        // Predicated region
        $region61: #{tpu_custom_call.1} parent=51 // pred_check
          %p400 = pneg %p132
        $region62: #{tpu_custom_call.1} parent=51 // pred_check_branch
          %402 = sbr.rel (%p400) target = $region64
        $region63: #{tpu_custom_call.1} parent=51 // pred_region
          %403 = dma.done %s396, 2048
        $region64: #{tpu_custom_call.1} parent=51 // pred_fallthru
          _
        %p404 = scmp.lt.s32.totalorder %s33, 1
        %s405 = scalar_select %p404, %s33, 1
        %s406 = smul.addr %s405, 16
        %s407 = smul.addr %s406, 8
        %s408 = scalar_lea.vmem %s0, %s407
        %p409 = pneg %p54
        %p410 = pneg %p51
        %s411 = sand.u32 %s67, 1
        %s412 = scalar_lea.sflag [#allocation3], %s411
        %s413 = sand.u32 %s67, 1
        %s414 = smul.addr %s413, 256
        %s415 = scalar_lea.vmem [#allocation2], %s414
        %p416 = pneg %p80
        %p417 = pneg %p77
        %s418 = sand.u32 %s33, 1
        %s419 = scalar_lea.sflag [#allocation6], %s418
        %s420 = sand.u32 %s93, 1
        %s421 = smul.addr %s420, 128
        %s422 = scalar_lea.vmem [#allocation5], %s421
        %p423 = pneg %p106
        %p424 = pneg %p103
        %s425 = sand.u32 %s33, 1
        %s426 = scalar_lea.sflag [#allocation6], %s425
        %s427 = sand.u32 %s119, 1
        %s428 = smul.addr %s427, 128
        %s429 = scalar_lea.vmem [#allocation7], %s428
        %p430 = pneg %p132
        %p431 = pneg %p129
        %p432 = pneg %p153
        %p433 = pneg %p150
        %p434 = pneg %p174
        %p435 = pneg %p171
        %p436 = pneg %p195
        %p437 = pneg %p192
        %p438 = pneg %p216
        %p439 = pneg %p213
        %p440 = pneg %p242
        %p441 = pneg %p239
        %s442 = sand.u32 %s229, 1
        %s443 = scalar_lea.sflag [#allocation4], %s442
        %s444 = sand.u32 %s229, 1
        %s445 = smul.addr %s444, 128
        %s446 = scalar_lea.vmem [#allocation8], %s445
        %p447 = pneg %p268
        %p448 = pneg %p265
        %s449 = sand.u32 %s255, 1
        %s450 = scalar_lea.sflag [#allocation10], %s449
        %s451 = sand.u32 %s255, 1
        %s452 = smul.addr %s451, 256
        %s453 = scalar_lea.vmem [#allocation9], %s452
        %p454 = scmp.lt.s32.totalorder %s33, 1
        %s455 = scalar_select %p454, %s33, 1
        %s456 = smul.addr %s455, 16
        %s457 = smul.addr %s456, 8
        %s458 = scalar_lea.vmem %s0, %s457
        %v459 = vld [vmem:[%s458] sm:$0xff]
        %v460 = vld [vmem:[%s458 + $0x8] sm:$0xff]
        %v461 = vld [vmem:[%s458 + $0x10] sm:$0xff]
        %v462 = vld [vmem:[%s458 + $0x18] sm:$0xff]
        %v463 = vld [vmem:[%s458 + $0x20] sm:$0xff]
        %v464 = vld [vmem:[%s458 + $0x28] sm:$0xff]
        %v465 = vld [vmem:[%s458 + $0x30] sm:$0xff]
        %v466 = vld [vmem:[%s458 + $0x38] sm:$0xff]
        %v467 = vld [vmem:[%s458 + $0x40] sm:$0xff]
        %v468 = vld [vmem:[%s458 + $0x48] sm:$0xff]
        %v469 = vld [vmem:[%s458 + $0x50] sm:$0xff]
        %v470 = vld [vmem:[%s458 + $0x58] sm:$0xff]
        %v471 = vld [vmem:[%s458 + $0x60] sm:$0xff]
        %v472 = vld [vmem:[%s458 + $0x68] sm:$0xff]
        %v473 = vld [vmem:[%s458 + $0x70] sm:$0xff]
        %v474 = vld [vmem:[%s458 + $0x78] sm:$0xff]
        %vm475 = vcmp.eq.s32.totalorder %v459, 0
        %vm476 = vcmp.eq.s32.totalorder %v460, 0
        %vm477 = vcmp.eq.s32.totalorder %v461, 0
        %vm478 = vcmp.eq.s32.totalorder %v462, 0
        %vm479 = vcmp.eq.s32.totalorder %v463, 0
        %vm480 = vcmp.eq.s32.totalorder %v464, 0
        %vm481 = vcmp.eq.s32.totalorder %v465, 0
        %vm482 = vcmp.eq.s32.totalorder %v466, 0
        %vm483 = vcmp.eq.s32.totalorder %v467, 0
        %vm484 = vcmp.eq.s32.totalorder %v468, 0
        %vm485 = vcmp.eq.s32.totalorder %v469, 0
        %vm486 = vcmp.eq.s32.totalorder %v470, 0
        %vm487 = vcmp.eq.s32.totalorder %v471, 0
        %vm488 = vcmp.eq.s32.totalorder %v472, 0
        %vm489 = vcmp.eq.s32.totalorder %v473, 0
        %vm490 = vcmp.eq.s32.totalorder %v474, 0
        %v491 = vsel %vm475, -1e+09, 0.0
        %v492 = vsel %vm476, -1e+09, 0.0
        %v493 = vsel %vm477, -1e+09, 0.0
        %v494 = vsel %vm478, -1e+09, 0.0
        %v495 = vsel %vm479, -1e+09, 0.0
        %v496 = vsel %vm480, -1e+09, 0.0
        %v497 = vsel %vm481, -1e+09, 0.0
        %v498 = vsel %vm482, -1e+09, 0.0
        %v499 = vsel %vm483, -1e+09, 0.0
        %v500 = vsel %vm484, -1e+09, 0.0
        %v501 = vsel %vm485, -1e+09, 0.0
        %v502 = vsel %vm486, -1e+09, 0.0
        %v503 = vsel %vm487, -1e+09, 0.0
        %v504 = vsel %vm488, -1e+09, 0.0
        %v505 = vsel %vm489, -1e+09, 0.0
        %v506 = vsel %vm490, -1e+09, 0.0
        %v507 = vld [vmem:[%s381] sm:$0xff]
        %v508 = vld [vmem:[%s381 + $0x8] sm:$0xff]
        %v509 = vld [vmem:[%s381 + $0x10] sm:$0xff]
        %v510 = vld [vmem:[%s381 + $0x18] sm:$0xff]
        %v511 = vld [vmem:[%s381 + $0x20] sm:$0xff]
        %v512 = vld [vmem:[%s381 + $0x28] sm:$0xff]
        %v513 = vld [vmem:[%s381 + $0x30] sm:$0xff]
        %v514 = vld [vmem:[%s381 + $0x38] sm:$0xff]
        %v515 = vld [vmem:[%s381 + $0x40] sm:$0xff]
        %v516 = vld [vmem:[%s381 + $0x48] sm:$0xff]
        %v517 = vld [vmem:[%s381 + $0x50] sm:$0xff]
        %v518 = vld [vmem:[%s381 + $0x58] sm:$0xff]
        %v519 = vld [vmem:[%s381 + $0x60] sm:$0xff]
        %v520 = vld [vmem:[%s381 + $0x68] sm:$0xff]
        %v521 = vld [vmem:[%s381 + $0x70] sm:$0xff]
        %v522 = vld [vmem:[%s381 + $0x78] sm:$0xff]
        %v523 = vld [vmem:[%s381 + $0x80] sm:$0xff]
        %v524 = vld [vmem:[%s381 + $0x88] sm:$0xff]
        %v525 = vld [vmem:[%s381 + $0x90] sm:$0xff]
        %v526 = vld [vmem:[%s381 + $0x98] sm:$0xff]
        %v527 = vld [vmem:[%s381 + $0xa0] sm:$0xff]
        %v528 = vld [vmem:[%s381 + $0xa8] sm:$0xff]
        %v529 = vld [vmem:[%s381 + $0xb0] sm:$0xff]
        %v530 = vld [vmem:[%s381 + $0xb8] sm:$0xff]
        %v531 = vld [vmem:[%s381 + $0xc0] sm:$0xff]
        %v532 = vld [vmem:[%s381 + $0xc8] sm:$0xff]
        %v533 = vld [vmem:[%s381 + $0xd0] sm:$0xff]
        %v534 = vld [vmem:[%s381 + $0xd8] sm:$0xff]
        %v535 = vld [vmem:[%s381 + $0xe0] sm:$0xff]
        %v536 = vld [vmem:[%s381 + $0xe8] sm:$0xff]
        %v537 = vld [vmem:[%s381 + $0xf0] sm:$0xff]
        %v538 = vld [vmem:[%s381 + $0xf8] sm:$0xff]
        %v539 = vadd.f32 %v507, %v491
        %v540 = vadd.f32 %v508, %v492
        %v541 = vadd.f32 %v509, %v493
        %v542 = vadd.f32 %v510, %v494
        %v543 = vadd.f32 %v511, %v495
        %v544 = vadd.f32 %v512, %v496
        %v545 = vadd.f32 %v513, %v497
        %v546 = vadd.f32 %v514, %v498
        %v547 = vadd.f32 %v515, %v499
        %v548 = vadd.f32 %v516, %v500
        %v549 = vadd.f32 %v517, %v501
        %v550 = vadd.f32 %v518, %v502
        %v551 = vadd.f32 %v519, %v503
        %v552 = vadd.f32 %v520, %v504
        %v553 = vadd.f32 %v521, %v505
        %v554 = vadd.f32 %v522, %v506
        %v555 = vadd.f32 %v523, %v491
        %v556 = vadd.f32 %v524, %v492
        %v557 = vadd.f32 %v525, %v493
        %v558 = vadd.f32 %v526, %v494
        %v559 = vadd.f32 %v527, %v495
        %v560 = vadd.f32 %v528, %v496
        %v561 = vadd.f32 %v529, %v497
        %v562 = vadd.f32 %v530, %v498
        %v563 = vadd.f32 %v531, %v499
        %v564 = vadd.f32 %v532, %v500
        %v565 = vadd.f32 %v533, %v501
        %v566 = vadd.f32 %v534, %v502
        %v567 = vadd.f32 %v535, %v503
        %v568 = vadd.f32 %v536, %v504
        %v569 = vadd.f32 %v537, %v505
        %v570 = vadd.f32 %v538, %v506
        %571 = vmax.xlane.f32.xlu0 %v539
        %v572 = vpop.xlane.xlu0 %571
        %573 = vmax.xlane.f32.xlu0 %v540
        %v574 = vpop.xlane.xlu0 %573
        %575 = vmax.xlane.f32.xlu0 %v541
        %v576 = vpop.xlane.xlu0 %575
        %577 = vmax.xlane.f32.xlu0 %v542
        %v578 = vpop.xlane.xlu0 %577
        %579 = vmax.xlane.f32.xlu0 %v543
        %v580 = vpop.xlane.xlu0 %579
        %581 = vmax.xlane.f32.xlu0 %v544
        %v582 = vpop.xlane.xlu0 %581
        %583 = vmax.xlane.f32.xlu0 %v545
        %v584 = vpop.xlane.xlu0 %583
        %585 = vmax.xlane.f32.xlu0 %v546
        %v586 = vpop.xlane.xlu0 %585
        %587 = vmax.xlane.f32.xlu0 %v547
        %v588 = vpop.xlane.xlu0 %587
        %589 = vmax.xlane.f32.xlu0 %v548
        %v590 = vpop.xlane.xlu0 %589
        %591 = vmax.xlane.f32.xlu0 %v549
        %v592 = vpop.xlane.xlu0 %591
        %593 = vmax.xlane.f32.xlu0 %v550
        %v594 = vpop.xlane.xlu0 %593
        %595 = vmax.xlane.f32.xlu0 %v551
        %v596 = vpop.xlane.xlu0 %595
        %597 = vmax.xlane.f32.xlu0 %v552
        %v598 = vpop.xlane.xlu0 %597
        %599 = vmax.xlane.f32.xlu0 %v553
        %v600 = vpop.xlane.xlu0 %599
        %601 = vmax.xlane.f32.xlu0 %v554
        %v602 = vpop.xlane.xlu0 %601
        %603 = vmax.xlane.f32.xlu0 %v555
        %v604 = vpop.xlane.xlu0 %603
        %605 = vmax.xlane.f32.xlu0 %v556
        %v606 = vpop.xlane.xlu0 %605
        %607 = vmax.xlane.f32.xlu0 %v557
        %v608 = vpop.xlane.xlu0 %607
        %609 = vmax.xlane.f32.xlu0 %v558
        %v610 = vpop.xlane.xlu0 %609
        %611 = vmax.xlane.f32.xlu0 %v559
        %v612 = vpop.xlane.xlu0 %611
        %613 = vmax.xlane.f32.xlu0 %v560
        %v614 = vpop.xlane.xlu0 %613
        %615 = vmax.xlane.f32.xlu0 %v561
        %v616 = vpop.xlane.xlu0 %615
        %617 = vmax.xlane.f32.xlu0 %v562
        %v618 = vpop.xlane.xlu0 %617
        %619 = vmax.xlane.f32.xlu0 %v563
        %v620 = vpop.xlane.xlu0 %619
        %621 = vmax.xlane.f32.xlu0 %v564
        %v622 = vpop.xlane.xlu0 %621
        %623 = vmax.xlane.f32.xlu0 %v565
        %v624 = vpop.xlane.xlu0 %623
        %625 = vmax.xlane.f32.xlu0 %v566
        %v626 = vpop.xlane.xlu0 %625
        %627 = vmax.xlane.f32.xlu0 %v567
        %v628 = vpop.xlane.xlu0 %627
        %629 = vmax.xlane.f32.xlu0 %v568
        %v630 = vpop.xlane.xlu0 %629
        %631 = vmax.xlane.f32.xlu0 %v569
        %v632 = vpop.xlane.xlu0 %631
        %633 = vmax.xlane.f32.xlu0 %v570
        %v634 = vpop.xlane.xlu0 %633
        %v635 = vsub.f32 %v539, %v572
        %v636 = vsub.f32 %v540, %v574
        %v637 = vsub.f32 %v541, %v576
        %v638 = vsub.f32 %v542, %v578
        %v639 = vsub.f32 %v543, %v580
        %v640 = vsub.f32 %v544, %v582
        %v641 = vsub.f32 %v545, %v584
        %v642 = vsub.f32 %v546, %v586
        %v643 = vsub.f32 %v547, %v588
        %v644 = vsub.f32 %v548, %v590
        %v645 = vsub.f32 %v549, %v592
        %v646 = vsub.f32 %v550, %v594
        %v647 = vsub.f32 %v551, %v596
        %v648 = vsub.f32 %v552, %v598
        %v649 = vsub.f32 %v553, %v600
        %v650 = vsub.f32 %v554, %v602
        %v651 = vsub.f32 %v555, %v604
        %v652 = vsub.f32 %v556, %v606
        %v653 = vsub.f32 %v557, %v608
        %v654 = vsub.f32 %v558, %v610
        %v655 = vsub.f32 %v559, %v612
        %v656 = vsub.f32 %v560, %v614
        %v657 = vsub.f32 %v561, %v616
        %v658 = vsub.f32 %v562, %v618
        %v659 = vsub.f32 %v563, %v620
        %v660 = vsub.f32 %v564, %v622
        %v661 = vsub.f32 %v565, %v624
        %v662 = vsub.f32 %v566, %v626
        %v663 = vsub.f32 %v567, %v628
        %v664 = vsub.f32 %v568, %v630
        %v665 = vsub.f32 %v569, %v632
        %v666 = vsub.f32 %v570, %v634
        %v667 = vmul.f32 %v635, 1.442695
        %v668 = vpow.pop %v667
        %v669 = vmul.f32 %v636, 1.442695
        %v670 = vpow.pop %v669
        %v671 = vmul.f32 %v637, 1.442695
        %v672 = vpow.pop %v671
        %v673 = vmul.f32 %v638, 1.442695
        %v674 = vpow.pop %v673
        %v675 = vmul.f32 %v639, 1.442695
        %v676 = vpow.pop %v675
        %v677 = vmul.f32 %v640, 1.442695
        %v678 = vpow.pop %v677
        %v679 = vmul.f32 %v641, 1.442695
        %v680 = vpow.pop %v679
        %v681 = vmul.f32 %v642, 1.442695
        %v682 = vpow.pop %v681
        %v683 = vmul.f32 %v643, 1.442695
        %v684 = vpow.pop %v683
        %v685 = vmul.f32 %v644, 1.442695
        %v686 = vpow.pop %v685
        %v687 = vmul.f32 %v645, 1.442695
        %v688 = vpow.pop %v687
        %v689 = vmul.f32 %v646, 1.442695
        %v690 = vpow.pop %v689
        %v691 = vmul.f32 %v647, 1.442695
        %v692 = vpow.pop %v691
        %v693 = vmul.f32 %v648, 1.442695
        %v694 = vpow.pop %v693
        %v695 = vmul.f32 %v649, 1.442695
        %v696 = vpow.pop %v695
        %v697 = vmul.f32 %v650, 1.442695
        %v698 = vpow.pop %v697
        %v699 = vmul.f32 %v651, 1.442695
        %v700 = vpow.pop %v699
        %v701 = vmul.f32 %v652, 1.442695
        %v702 = vpow.pop %v701
        %v703 = vmul.f32 %v653, 1.442695
        %v704 = vpow.pop %v703
        %v705 = vmul.f32 %v654, 1.442695
        %v706 = vpow.pop %v705
        %v707 = vmul.f32 %v655, 1.442695
        %v708 = vpow.pop %v707
        %v709 = vmul.f32 %v656, 1.442695
        %v710 = vpow.pop %v709
        %v711 = vmul.f32 %v657, 1.442695
        %v712 = vpow.pop %v711
        %v713 = vmul.f32 %v658, 1.442695
        %v714 = vpow.pop %v713
        %v715 = vmul.f32 %v659, 1.442695
        %v716 = vpow.pop %v715
        %v717 = vmul.f32 %v660, 1.442695
        %v718 = vpow.pop %v717
        %v719 = vmul.f32 %v661, 1.442695
        %v720 = vpow.pop %v719
        %v721 = vmul.f32 %v662, 1.442695
        %v722 = vpow.pop %v721
        %v723 = vmul.f32 %v663, 1.442695
        %v724 = vpow.pop %v723
        %v725 = vmul.f32 %v664, 1.442695
        %v726 = vpow.pop %v725
        %v727 = vmul.f32 %v665, 1.442695
        %v728 = vpow.pop %v727
        %v729 = vmul.f32 %v666, 1.442695
        %v730 = vpow.pop %v729
        %731 = vadd.xlane.f32.xlu0 %v668
        %v732 = vpop.xlane.xlu0 %731
        %733 = vadd.xlane.f32.xlu0 %v670
        %v734 = vpop.xlane.xlu0 %733
        %735 = vadd.xlane.f32.xlu0 %v672
        %v736 = vpop.xlane.xlu0 %735
        %737 = vadd.xlane.f32.xlu0 %v674
        %v738 = vpop.xlane.xlu0 %737
        %739 = vadd.xlane.f32.xlu0 %v676
        %v740 = vpop.xlane.xlu0 %739
        %741 = vadd.xlane.f32.xlu0 %v678
        %v742 = vpop.xlane.xlu0 %741
        %743 = vadd.xlane.f32.xlu0 %v680
        %v744 = vpop.xlane.xlu0 %743
        %745 = vadd.xlane.f32.xlu0 %v682
        %v746 = vpop.xlane.xlu0 %745
        %747 = vadd.xlane.f32.xlu0 %v684
        %v748 = vpop.xlane.xlu0 %747
        %749 = vadd.xlane.f32.xlu0 %v686
        %v750 = vpop.xlane.xlu0 %749
        %751 = vadd.xlane.f32.xlu0 %v688
        %v752 = vpop.xlane.xlu0 %751
        %753 = vadd.xlane.f32.xlu0 %v690
        %v754 = vpop.xlane.xlu0 %753
        %755 = vadd.xlane.f32.xlu0 %v692
        %v756 = vpop.xlane.xlu0 %755
        %757 = vadd.xlane.f32.xlu0 %v694
        %v758 = vpop.xlane.xlu0 %757
        %759 = vadd.xlane.f32.xlu0 %v696
        %v760 = vpop.xlane.xlu0 %759
        %761 = vadd.xlane.f32.xlu0 %v698
        %v762 = vpop.xlane.xlu0 %761
        %763 = vadd.xlane.f32.xlu0 %v700
        %v764 = vpop.xlane.xlu0 %763
        %765 = vadd.xlane.f32.xlu0 %v702
        %v766 = vpop.xlane.xlu0 %765
        %767 = vadd.xlane.f32.xlu0 %v704
        %v768 = vpop.xlane.xlu0 %767
        %769 = vadd.xlane.f32.xlu0 %v706
        %v770 = vpop.xlane.xlu0 %769
        %771 = vadd.xlane.f32.xlu0 %v708
        %v772 = vpop.xlane.xlu0 %771
        %773 = vadd.xlane.f32.xlu0 %v710
        %v774 = vpop.xlane.xlu0 %773
        %775 = vadd.xlane.f32.xlu0 %v712
        %v776 = vpop.xlane.xlu0 %775
        %777 = vadd.xlane.f32.xlu0 %v714
        %v778 = vpop.xlane.xlu0 %777
        %779 = vadd.xlane.f32.xlu0 %v716
        %v780 = vpop.xlane.xlu0 %779
        %781 = vadd.xlane.f32.xlu0 %v718
        %v782 = vpop.xlane.xlu0 %781
        %783 = vadd.xlane.f32.xlu0 %v720
        %v784 = vpop.xlane.xlu0 %783
        %785 = vadd.xlane.f32.xlu0 %v722
        %v786 = vpop.xlane.xlu0 %785
        %787 = vadd.xlane.f32.xlu0 %v724
        %v788 = vpop.xlane.xlu0 %787
        %789 = vadd.xlane.f32.xlu0 %v726
        %v790 = vpop.xlane.xlu0 %789
        %791 = vadd.xlane.f32.xlu0 %v728
        %v792 = vpop.xlane.xlu0 %791
        %793 = vadd.xlane.f32.xlu0 %v730
        %v794 = vpop.xlane.xlu0 %793
        %v795 = vrcp.pop %v732
        %v796 = vrcp.pop %v734
        %v797 = vrcp.pop %v736
        %v798 = vrcp.pop %v738
        %v799 = vrcp.pop %v740
        %v800 = vrcp.pop %v742
        %v801 = vrcp.pop %v744
        %v802 = vrcp.pop %v746
        %v803 = vrcp.pop %v748
        %v804 = vrcp.pop %v750
        %v805 = vrcp.pop %v752
        %v806 = vrcp.pop %v754
        %v807 = vrcp.pop %v756
        %v808 = vrcp.pop %v758
        %v809 = vrcp.pop %v760
        %v810 = vrcp.pop %v762
        %v811 = vrcp.pop %v764
        %v812 = vrcp.pop %v766
        %v813 = vrcp.pop %v768
        %v814 = vrcp.pop %v770
        %v815 = vrcp.pop %v772
        %v816 = vrcp.pop %v774
        %v817 = vrcp.pop %v776
        %v818 = vrcp.pop %v778
        %v819 = vrcp.pop %v780
        %v820 = vrcp.pop %v782
        %v821 = vrcp.pop %v784
        %v822 = vrcp.pop %v786
        %v823 = vrcp.pop %v788
        %v824 = vrcp.pop %v790
        %v825 = vrcp.pop %v792
        %v826 = vrcp.pop %v794
        %v827 = vmul.f32 %v668, %v795
        %v828 = vmul.f32 %v670, %v796
        %v829 = vmul.f32 %v672, %v797
        %v830 = vmul.f32 %v674, %v798
        %v831 = vmul.f32 %v676, %v799
        %v832 = vmul.f32 %v678, %v800
        %v833 = vmul.f32 %v680, %v801
        %v834 = vmul.f32 %v682, %v802
        %v835 = vmul.f32 %v684, %v803
        %v836 = vmul.f32 %v686, %v804
        %v837 = vmul.f32 %v688, %v805
        %v838 = vmul.f32 %v690, %v806
        %v839 = vmul.f32 %v692, %v807
        %v840 = vmul.f32 %v694, %v808
        %v841 = vmul.f32 %v696, %v809
        %v842 = vmul.f32 %v698, %v810
        %v843 = vmul.f32 %v700, %v811
        %v844 = vmul.f32 %v702, %v812
        %v845 = vmul.f32 %v704, %v813
        %v846 = vmul.f32 %v706, %v814
        %v847 = vmul.f32 %v708, %v815
        %v848 = vmul.f32 %v710, %v816
        %v849 = vmul.f32 %v712, %v817
        %v850 = vmul.f32 %v714, %v818
        %v851 = vmul.f32 %v716, %v819
        %v852 = vmul.f32 %v718, %v820
        %v853 = vmul.f32 %v720, %v821
        %v854 = vmul.f32 %v722, %v822
        %v855 = vmul.f32 %v724, %v823
        %v856 = vmul.f32 %v726, %v824
        %v857 = vmul.f32 %v728, %v825
        %v858 = vmul.f32 %v730, %v826
        %859 = vst [vmem:[%s453] sm:$0xff] %v827
        %860 = vst [vmem:[%s453 + $0x8] sm:$0xff] %v828
        %861 = vst [vmem:[%s453 + $0x10] sm:$0xff] %v829
        %862 = vst [vmem:[%s453 + $0x18] sm:$0xff] %v830
        %863 = vst [vmem:[%s453 + $0x20] sm:$0xff] %v831
        %864 = vst [vmem:[%s453 + $0x28] sm:$0xff] %v832
        %865 = vst [vmem:[%s453 + $0x30] sm:$0xff] %v833
        %866 = vst [vmem:[%s453 + $0x38] sm:$0xff] %v834
        %867 = vst [vmem:[%s453 + $0x40] sm:$0xff] %v835
        %868 = vst [vmem:[%s453 + $0x48] sm:$0xff] %v836
        %869 = vst [vmem:[%s453 + $0x50] sm:$0xff] %v837
        %870 = vst [vmem:[%s453 + $0x58] sm:$0xff] %v838
        %871 = vst [vmem:[%s453 + $0x60] sm:$0xff] %v839
        %872 = vst [vmem:[%s453 + $0x68] sm:$0xff] %v840
        %873 = vst [vmem:[%s453 + $0x70] sm:$0xff] %v841
        %874 = vst [vmem:[%s453 + $0x78] sm:$0xff] %v842
        %875 = vst [vmem:[%s453 + $0x80] sm:$0xff] %v843
        %876 = vst [vmem:[%s453 + $0x88] sm:$0xff] %v844
        %877 = vst [vmem:[%s453 + $0x90] sm:$0xff] %v845
        %878 = vst [vmem:[%s453 + $0x98] sm:$0xff] %v846
        %879 = vst [vmem:[%s453 + $0xa0] sm:$0xff] %v847
        %880 = vst [vmem:[%s453 + $0xa8] sm:$0xff] %v848
        %881 = vst [vmem:[%s453 + $0xb0] sm:$0xff] %v849
        %882 = vst [vmem:[%s453 + $0xb8] sm:$0xff] %v850
        %883 = vst [vmem:[%s453 + $0xc0] sm:$0xff] %v851
        %884 = vst [vmem:[%s453 + $0xc8] sm:$0xff] %v852
        %885 = vst [vmem:[%s453 + $0xd0] sm:$0xff] %v853
        %886 = vst [vmem:[%s453 + $0xd8] sm:$0xff] %v854
        %887 = vst [vmem:[%s453 + $0xe0] sm:$0xff] %v855
        %888 = vst [vmem:[%s453 + $0xe8] sm:$0xff] %v856
        %889 = vst [vmem:[%s453 + $0xf0] sm:$0xff] %v857
        %890 = vst [vmem:[%s453 + $0xf8] sm:$0xff] %v858
        %v891 = vld [vmem:[%s399] sm:$0xff]
        %v892 = vld [vmem:[%s399 + $0x8] sm:$0xff]
        %v893 = vld [vmem:[%s399 + $0x10] sm:$0xff]
        %v894 = vld [vmem:[%s399 + $0x18] sm:$0xff]
        %v895 = vld [vmem:[%s399 + $0x20] sm:$0xff]
        %v896 = vld [vmem:[%s399 + $0x28] sm:$0xff]
        %v897 = vld [vmem:[%s399 + $0x30] sm:$0xff]
        %v898 = vld [vmem:[%s399 + $0x38] sm:$0xff]
        %v899 = vld [vmem:[%s399 + $0x40] sm:$0xff]
        %v900 = vld [vmem:[%s399 + $0x48] sm:$0xff]
        %v901 = vld [vmem:[%s399 + $0x50] sm:$0xff]
        %v902 = vld [vmem:[%s399 + $0x58] sm:$0xff]
        %v903 = vld [vmem:[%s399 + $0x60] sm:$0xff]
        %v904 = vld [vmem:[%s399 + $0x68] sm:$0xff]
        %v905 = vld [vmem:[%s399 + $0x70] sm:$0xff]
        %v906 = vld [vmem:[%s399 + $0x78] sm:$0xff]
        %v907 = vld [vmem:[%s4] sm:$0xff]
        %v908 = vld [vmem:[%s4 + $0x8] sm:$0xff]
        %v909 = vld [vmem:[%s4 + $0x10] sm:$0xff]
        %v910 = vld [vmem:[%s4 + $0x18] sm:$0xff]
        %v911 = vld [vmem:[%s4 + $0x20] sm:$0xff]
        %v912 = vld [vmem:[%s4 + $0x28] sm:$0xff]
        %v913 = vld [vmem:[%s4 + $0x30] sm:$0xff]
        %v914 = vld [vmem:[%s4 + $0x38] sm:$0xff]
        %v915 = vld [vmem:[%s4 + $0x40] sm:$0xff]
        %v916 = vld [vmem:[%s4 + $0x48] sm:$0xff]
        %v917 = vld [vmem:[%s4 + $0x50] sm:$0xff]
        %v918 = vld [vmem:[%s4 + $0x58] sm:$0xff]
        %v919 = vld [vmem:[%s4 + $0x60] sm:$0xff]
        %v920 = vld [vmem:[%s4 + $0x68] sm:$0xff]
        %v921 = vld [vmem:[%s4 + $0x70] sm:$0xff]
        %v922 = vld [vmem:[%s4 + $0x78] sm:$0xff]
        %v923 = vld [vmem:[%s4 + $0x80] sm:$0xff]
        %v924 = vld [vmem:[%s4 + $0x88] sm:$0xff]
        %v925 = vld [vmem:[%s4 + $0x90] sm:$0xff]
        %v926 = vld [vmem:[%s4 + $0x98] sm:$0xff]
        %v927 = vld [vmem:[%s4 + $0xa0] sm:$0xff]
        %v928 = vld [vmem:[%s4 + $0xa8] sm:$0xff]
        %v929 = vld [vmem:[%s4 + $0xb0] sm:$0xff]
        %v930 = vld [vmem:[%s4 + $0xb8] sm:$0xff]
        %v931 = vld [vmem:[%s4 + $0xc0] sm:$0xff]
        %v932 = vld [vmem:[%s4 + $0xc8] sm:$0xff]
        %v933 = vld [vmem:[%s4 + $0xd0] sm:$0xff]
        %v934 = vld [vmem:[%s4 + $0xd8] sm:$0xff]
        %v935 = vld [vmem:[%s4 + $0xe0] sm:$0xff]
        %v936 = vld [vmem:[%s4 + $0xe8] sm:$0xff]
        %v937 = vld [vmem:[%s4 + $0xf0] sm:$0xff]
        %v938 = vld [vmem:[%s4 + $0xf8] sm:$0xff]
        %v939 = vld [vmem:[%s5] sm:$0xff]
        %v940 = vld [vmem:[%s5 + $0x8] sm:$0xff]
        %v941 = vld [vmem:[%s5 + $0x10] sm:$0xff]
        %v942 = vld [vmem:[%s5 + $0x18] sm:$0xff]
        %v943 = vld [vmem:[%s5 + $0x20] sm:$0xff]
        %v944 = vld [vmem:[%s5 + $0x28] sm:$0xff]
        %v945 = vld [vmem:[%s5 + $0x30] sm:$0xff]
        %v946 = vld [vmem:[%s5 + $0x38] sm:$0xff]
        %v947 = vld [vmem:[%s5 + $0x40] sm:$0xff]
        %v948 = vld [vmem:[%s5 + $0x48] sm:$0xff]
        %v949 = vld [vmem:[%s5 + $0x50] sm:$0xff]
        %v950 = vld [vmem:[%s5 + $0x58] sm:$0xff]
        %v951 = vld [vmem:[%s5 + $0x60] sm:$0xff]
        %v952 = vld [vmem:[%s5 + $0x68] sm:$0xff]
        %v953 = vld [vmem:[%s5 + $0x70] sm:$0xff]
        %v954 = vld [vmem:[%s5 + $0x78] sm:$0xff]
        %955 = vmatprep.subr.mxu0 0.0
        %956 = vmatpush1.msra.mxu0 %v907
        %957 = vmatprep.subr.mxu0 0.0
        %958 = vmatpush1.msra.mxu0 %v908
        %959 = vmatprep.subr.mxu0 0.0
        %960 = vmatpush1.msra.mxu0 %v909
        %961 = vmatprep.subr.mxu0 0.0
        %962 = vmatpush1.msra.mxu0 %v910
        %963 = vmatprep.subr.mxu0 0.0
        %964 = vmatpush1.msra.mxu0 %v911
        %965 = vmatprep.subr.mxu0 0.0
        %966 = vmatpush1.msra.mxu0 %v912
        %967 = vmatprep.subr.mxu0 0.0
        %968 = vmatpush1.msra.mxu0 %v913
        %969 = vmatprep.subr.mxu0 0.0
        %970 = vmatpush1.msra.mxu0 %v914
        %971 = vmatprep.subr.mxu0 0.0
        %972 = vmatpush1.msra.mxu0 %v915
        %973 = vmatprep.subr.mxu0 0.0
        %974 = vmatpush1.msra.mxu0 %v916
        %975 = vmatprep.subr.mxu0 0.0
        %976 = vmatpush1.msra.mxu0 %v917
        %977 = vmatprep.subr.mxu0 0.0
        %978 = vmatpush1.msra.mxu0 %v918
        %979 = vmatprep.subr.mxu0 0.0
        %980 = vmatpush1.msra.mxu0 %v919
        %981 = vmatprep.subr.mxu0 0.0
        %982 = vmatpush1.msra.mxu0 %v920
        %983 = vmatprep.subr.mxu0 0.0
        %984 = vmatpush1.msra.mxu0 %v921
        %985 = vmatprep.subr.mxu0 0.0
        %986 = vmatpush1.msra.mxu0 %v922
        %987 = vmatprep.subr.mxu0 0.0
        %988 = vmatpush1.msra.mxu0 0.0
        %989 = vmatprep.subr.mxu0 0.0
        %990 = vmatpush1.msra.mxu0 0.0
        %991 = vmatprep.subr.mxu0 0.0
        %992 = vmatpush1.msra.mxu0 0.0
        %993 = vmatprep.subr.mxu0 0.0
        %994 = vmatpush1.msra.mxu0 0.0
        %995 = vmatprep.subr.mxu0 0.0
        %996 = vmatpush1.msra.mxu0 0.0
        %997 = vmatprep.subr.mxu0 0.0
        %998 = vmatpush1.msra.mxu0 0.0
        %999 = vmatprep.subr.mxu0 0.0
        %1000 = vmatpush1.msra.mxu0 0.0
        %1001 = vmatprep.subr.mxu0 0.0
        %1002 = vmatpush1.msra.mxu0 0.0
        %1003 = vmatprep.subr.mxu0 0.0
        %1004 = vmatpush1.msra.mxu0 0.0
        %1005 = vmatprep.subr.mxu0 0.0
        %1006 = vmatpush1.msra.mxu0 0.0
        %1007 = vmatprep.subr.mxu0 0.0
        %1008 = vmatpush1.msra.mxu0 0.0
        %1009 = vmatprep.subr.mxu0 0.0
        %1010 = vmatpush1.msra.mxu0 0.0
        %1011 = vmatprep.subr.mxu0 0.0
        %1012 = vmatpush1.msra.mxu0 0.0
        %1013 = vmatprep.subr.mxu0 0.0
        %1014 = vmatpush1.msra.mxu0 0.0
        %1015 = vmatprep.subr.mxu0 0.0
        %1016 = vmatpush1.msra.mxu0 0.0
        %1017 = vmatprep.subr.mxu0 0.0
        %1018 = vmatpush1.msra.mxu0 0.0
        %1019 = vmatprep.mubr.f32.mxu0 0.0
        %1020 = vmatmul.mubr.f32.gmra.mrb[0].mxu0 %v891
        %v1021 = vpop.f32.mrb[0].mxu0
        %v1022 = vadd.f32 0.0, %v1021
        %v1023 = vpop.f32.mrb[0].mxu0
        %1024 = vmatprep.mubr.f32.mxu0 0.0
        %1025 = vmatmul.mubr.f32.gmra.mrb[0].mxu0 %v892
        %v1026 = vpop.f32.mrb[0].mxu0
        %v1027 = vadd.f32 0.0, %v1026
        %v1028 = vpop.f32.mrb[0].mxu0
        %1029 = vmatprep.mubr.f32.mxu0 0.0
        %1030 = vmatmul.mubr.f32.gmra.mrb[0].mxu0 %v893
        %v1031 = vpop.f32.mrb[0].mxu0
        %v1032 = vadd.f32 0.0, %v1031
        %v1033 = vpop.f32.mrb[0].mxu0
        %1034 = vmatprep.mubr.f32.mxu0 0.0
        %1035 = vmatmul.mubr.f32.gmra.mrb[0].mxu0 %v894
        %v1036 = vpop.f32.mrb[0].mxu0
        %v1037 = vadd.f32 0.0, %v1036
        %v1038 = vpop.f32.mrb[0].mxu0
        %1039 = vmatprep.mubr.f32.mxu0 0.0
        %1040 = vmatmul.mubr.f32.gmra.mrb[0].mxu0 %v895
        %v1041 = vpop.f32.mrb[0].mxu0
        %v1042 = vadd.f32 0.0, %v1041
        %v1043 = vpop.f32.mrb[0].mxu0
        %1044 = vmatprep.mubr.f32.mxu0 0.0
        %1045 = vmatmul.mubr.f32.gmra.mrb[0].mxu0 %v896
        %v1046 = vpop.f32.mrb[0].mxu0
        %v1047 = vadd.f32 0.0, %v1046
        %v1048 = vpop.f32.mrb[0].mxu0
        %1049 = vmatprep.mubr.f32.mxu0 0.0
        %1050 = vmatmul.mubr.f32.gmra.mrb[0].mxu0 %v897
        %v1051 = vpop.f32.mrb[0].mxu0
        %v1052 = vadd.f32 0.0, %v1051
        %v1053 = vpop.f32.mrb[0].mxu0
        %1054 = vmatprep.mubr.f32.mxu0 0.0
        %1055 = vmatmul.mubr.f32.gmra.mrb[0].mxu0 %v898
        %v1056 = vpop.f32.mrb[0].mxu0
        %v1057 = vadd.f32 0.0, %v1056
        %v1058 = vpop.f32.mrb[0].mxu0
        %1059 = vmatprep.mubr.f32.mxu0 0.0
        %1060 = vmatmul.mubr.f32.gmra.mrb[0].mxu0 %v899
        %v1061 = vpop.f32.mrb[0].mxu0
        %v1062 = vadd.f32 0.0, %v1061
        %v1063 = vpop.f32.mrb[0].mxu0
        %1064 = vmatprep.mubr.f32.mxu0 0.0
        %1065 = vmatmul.mubr.f32.gmra.mrb[0].mxu0 %v900
        %v1066 = vpop.f32.mrb[0].mxu0
        %v1067 = vadd.f32 0.0, %v1066
        %v1068 = vpop.f32.mrb[0].mxu0
        %1069 = vmatprep.mubr.f32.mxu0 0.0
        %1070 = vmatmul.mubr.f32.gmra.mrb[0].mxu0 %v901
        %v1071 = vpop.f32.mrb[0].mxu0
        %v1072 = vadd.f32 0.0, %v1071
        %v1073 = vpop.f32.mrb[0].mxu0
        %1074 = vmatprep.mubr.f32.mxu0 0.0
        %1075 = vmatmul.mubr.f32.gmra.mrb[0].mxu0 %v902
        %v1076 = vpop.f32.mrb[0].mxu0
        %v1077 = vadd.f32 0.0, %v1076
        %v1078 = vpop.f32.mrb[0].mxu0
        %1079 = vmatprep.mubr.f32.mxu0 0.0
        %1080 = vmatmul.mubr.f32.gmra.mrb[0].mxu0 %v903
        %v1081 = vpop.f32.mrb[0].mxu0
        %v1082 = vadd.f32 0.0, %v1081
        %v1083 = vpop.f32.mrb[0].mxu0
        %1084 = vmatprep.mubr.f32.mxu0 0.0
        %1085 = vmatmul.mubr.f32.gmra.mrb[0].mxu0 %v904
        %v1086 = vpop.f32.mrb[0].mxu0
        %v1087 = vadd.f32 0.0, %v1086
        %v1088 = vpop.f32.mrb[0].mxu0
        %1089 = vmatprep.mubr.f32.mxu0 0.0
        %1090 = vmatmul.mubr.f32.gmra.mrb[0].mxu0 %v905
        %v1091 = vpop.f32.mrb[0].mxu0
        %v1092 = vadd.f32 0.0, %v1091
        %v1093 = vpop.f32.mrb[0].mxu0
        %1094 = vmatprep.mubr.f32.mxu0 0.0
        %1095 = vmatmul.mubr.f32.gmra.mrb[0].mxu0 %v906
        %v1096 = vpop.f32.mrb[0].mxu0
        %v1097 = vadd.f32 0.0, %v1096
        %v1098 = vpop.f32.mrb[0].mxu0
        %1099 = vdwg.mxu0
        %1100 = vmatprep.subr.mxu0 0.0
        %1101 = vmatpush1.msra.mxu0 %v923
        %1102 = vmatprep.subr.mxu0 0.0
        %1103 = vmatpush1.msra.mxu0 %v924
        %1104 = vmatprep.subr.mxu0 0.0
        %1105 = vmatpush1.msra.mxu0 %v925
        %1106 = vmatprep.subr.mxu0 0.0
        %1107 = vmatpush1.msra.mxu0 %v926
        %1108 = vmatprep.subr.mxu0 0.0
        %1109 = vmatpush1.msra.mxu0 %v927
        %1110 = vmatprep.subr.mxu0 0.0
        %1111 = vmatpush1.msra.mxu0 %v928
        %1112 = vmatprep.subr.mxu0 0.0
        %1113 = vmatpush1.msra.mxu0 %v929
        %1114 = vmatprep.subr.mxu0 0.0
        %1115 = vmatpush1.msra.mxu0 %v930
        %1116 = vmatprep.subr.mxu0 0.0
        %1117 = vmatpush1.msra.mxu0 %v931
        %1118 = vmatprep.subr.mxu0 0.0
        %1119 = vmatpush1.msra.mxu0 %v932
        %1120 = vmatprep.subr.mxu0 0.0
        %1121 = vmatpush1.msra.mxu0 %v933
        %1122 = vmatprep.subr.mxu0 0.0
        %1123 = vmatpush1.msra.mxu0 %v934
        %1124 = vmatprep.subr.mxu0 0.0
        %1125 = vmatpush1.msra.mxu0 %v935
        %1126 = vmatprep.subr.mxu0 0.0
        %1127 = vmatpush1.msra.mxu0 %v936
        %1128 = vmatprep.subr.mxu0 0.0
        %1129 = vmatpush1.msra.mxu0 %v937
        %1130 = vmatprep.subr.mxu0 0.0
        %1131 = vmatpush1.msra.mxu0 %v938
        %1132 = vmatprep.subr.mxu0 0.0
        %1133 = vmatpush1.msra.mxu0 0.0
        %1134 = vmatprep.subr.mxu0 0.0
        %1135 = vmatpush1.msra.mxu0 0.0
        %1136 = vmatprep.subr.mxu0 0.0
        %1137 = vmatpush1.msra.mxu0 0.0
        %1138 = vmatprep.subr.mxu0 0.0
        %1139 = vmatpush1.msra.mxu0 0.0
        %1140 = vmatprep.subr.mxu0 0.0
        %1141 = vmatpush1.msra.mxu0 0.0
        %1142 = vmatprep.subr.mxu0 0.0
        %1143 = vmatpush1.msra.mxu0 0.0
        %1144 = vmatprep.subr.mxu0 0.0
        %1145 = vmatpush1.msra.mxu0 0.0
        %1146 = vmatprep.subr.mxu0 0.0
        %1147 = vmatpush1.msra.mxu0 0.0
        %1148 = vmatprep.subr.mxu0 0.0
        %1149 = vmatpush1.msra.mxu0 0.0
        %1150 = vmatprep.subr.mxu0 0.0
        %1151 = vmatpush1.msra.mxu0 0.0
        %1152 = vmatprep.subr.mxu0 0.0
        %1153 = vmatpush1.msra.mxu0 0.0
        %1154 = vmatprep.subr.mxu0 0.0
        %1155 = vmatpush1.msra.mxu0 0.0
        %1156 = vmatprep.subr.mxu0 0.0
        %1157 = vmatpush1.msra.mxu0 0.0
        %1158 = vmatprep.subr.mxu0 0.0
        %1159 = vmatpush1.msra.mxu0 0.0
        %1160 = vmatprep.subr.mxu0 0.0
        %1161 = vmatpush1.msra.mxu0 0.0
        %1162 = vmatprep.subr.mxu0 0.0
        %1163 = vmatpush1.msra.mxu0 0.0
        %1164 = vmatprep.mubr.f32.mxu0 0.0
        %1165 = vmatmul.mubr.f32.gmra.mrb[0].mxu0 %v891
        %v1166 = vpop.f32.mrb[0].mxu0
        %v1167 = vadd.f32 0.0, %v1166
        %v1168 = vpop.f32.mrb[0].mxu0
        %1169 = vmatprep.mubr.f32.mxu0 0.0
        %1170 = vmatmul.mubr.f32.gmra.mrb[0].mxu0 %v892
        %v1171 = vpop.f32.mrb[0].mxu0
        %v1172 = vadd.f32 0.0, %v1171
        %v1173 = vpop.f32.mrb[0].mxu0
        %1174 = vmatprep.mubr.f32.mxu0 0.0
        %1175 = vmatmul.mubr.f32.gmra.mrb[0].mxu0 %v893
        %v1176 = vpop.f32.mrb[0].mxu0
        %v1177 = vadd.f32 0.0, %v1176
        %v1178 = vpop.f32.mrb[0].mxu0
        %1179 = vmatprep.mubr.f32.mxu0 0.0
        %1180 = vmatmul.mubr.f32.gmra.mrb[0].mxu0 %v894
        %v1181 = vpop.f32.mrb[0].mxu0
        %v1182 = vadd.f32 0.0, %v1181
        %v1183 = vpop.f32.mrb[0].mxu0
        %1184 = vmatprep.mubr.f32.mxu0 0.0
        %1185 = vmatmul.mubr.f32.gmra.mrb[0].mxu0 %v895
        %v1186 = vpop.f32.mrb[0].mxu0
        %v1187 = vadd.f32 0.0, %v1186
        %v1188 = vpop.f32.mrb[0].mxu0
        %1189 = vmatprep.mubr.f32.mxu0 0.0
        %1190 = vmatmul.mubr.f32.gmra.mrb[0].mxu0 %v896
        %v1191 = vpop.f32.mrb[0].mxu0
        %v1192 = vadd.f32 0.0, %v1191
        %v1193 = vpop.f32.mrb[0].mxu0
        %1194 = vmatprep.mubr.f32.mxu0 0.0
        %1195 = vmatmul.mubr.f32.gmra.mrb[0].mxu0 %v897
        %v1196 = vpop.f32.mrb[0].mxu0
        %v1197 = vadd.f32 0.0, %v1196
        %v1198 = vpop.f32.mrb[0].mxu0
        %1199 = vmatprep.mubr.f32.mxu0 0.0
        %1200 = vmatmul.mubr.f32.gmra.mrb[0].mxu0 %v898
        %v1201 = vpop.f32.mrb[0].mxu0
        %v1202 = vadd.f32 0.0, %v1201
        %v1203 = vpop.f32.mrb[0].mxu0
        %1204 = vmatprep.mubr.f32.mxu0 0.0
        %1205 = vmatmul.mubr.f32.gmra.mrb[0].mxu0 %v899
        %v1206 = vpop.f32.mrb[0].mxu0
        %v1207 = vadd.f32 0.0, %v1206
        %v1208 = vpop.f32.mrb[0].mxu0
        %1209 = vmatprep.mubr.f32.mxu0 0.0
        %1210 = vmatmul.mubr.f32.gmra.mrb[0].mxu0 %v900
        %v1211 = vpop.f32.mrb[0].mxu0
        %v1212 = vadd.f32 0.0, %v1211
        %v1213 = vpop.f32.mrb[0].mxu0
        %1214 = vmatprep.mubr.f32.mxu0 0.0
        %1215 = vmatmul.mubr.f32.gmra.mrb[0].mxu0 %v901
        %v1216 = vpop.f32.mrb[0].mxu0
        %v1217 = vadd.f32 0.0, %v1216
        %v1218 = vpop.f32.mrb[0].mxu0
        %1219 = vmatprep.mubr.f32.mxu0 0.0
        %1220 = vmatmul.mubr.f32.gmra.mrb[0].mxu0 %v902
        %v1221 = vpop.f32.mrb[0].mxu0
        %v1222 = vadd.f32 0.0, %v1221
        %v1223 = vpop.f32.mrb[0].mxu0
        %1224 = vmatprep.mubr.f32.mxu0 0.0
        %1225 = vmatmul.mubr.f32.gmra.mrb[0].mxu0 %v903
        %v1226 = vpop.f32.mrb[0].mxu0
        %v1227 = vadd.f32 0.0, %v1226
        %v1228 = vpop.f32.mrb[0].mxu0
        %1229 = vmatprep.mubr.f32.mxu0 0.0
        %1230 = vmatmul.mubr.f32.gmra.mrb[0].mxu0 %v904
        %v1231 = vpop.f32.mrb[0].mxu0
        %v1232 = vadd.f32 0.0, %v1231
        %v1233 = vpop.f32.mrb[0].mxu0
        %1234 = vmatprep.mubr.f32.mxu0 0.0
        %1235 = vmatmul.mubr.f32.gmra.mrb[0].mxu0 %v905
        %v1236 = vpop.f32.mrb[0].mxu0
        %v1237 = vadd.f32 0.0, %v1236
        %v1238 = vpop.f32.mrb[0].mxu0
        %1239 = vmatprep.mubr.f32.mxu0 0.0
        %1240 = vmatmul.mubr.f32.gmra.mrb[0].mxu0 %v906
        %v1241 = vpop.f32.mrb[0].mxu0
        %v1242 = vadd.f32 0.0, %v1241
        %v1243 = vpop.f32.mrb[0].mxu0
        %1244 = vdwg.mxu0
        %1245 = vmatprep.subr.mxu0 0.0
        %1246 = vmatpush1.msra.mxu0 %v1022
        %1247 = vmatprep.subr.mxu0 0.0
        %1248 = vmatpush1.msra.mxu0 %v1027
        %1249 = vmatprep.subr.mxu0 0.0
        %1250 = vmatpush1.msra.mxu0 %v1032
        %1251 = vmatprep.subr.mxu0 0.0
        %1252 = vmatpush1.msra.mxu0 %v1037
        %1253 = vmatprep.subr.mxu0 0.0
        %1254 = vmatpush1.msra.mxu0 %v1042
        %1255 = vmatprep.subr.mxu0 0.0
        %1256 = vmatpush1.msra.mxu0 %v1047
        %1257 = vmatprep.subr.mxu0 0.0
        %1258 = vmatpush1.msra.mxu0 %v1052
        %1259 = vmatprep.subr.mxu0 0.0
        %1260 = vmatpush1.msra.mxu0 %v1057
        %1261 = vmatprep.subr.mxu0 0.0
        %1262 = vmatpush1.msra.mxu0 %v1062
        %1263 = vmatprep.subr.mxu0 0.0
        %1264 = vmatpush1.msra.mxu0 %v1067
        %1265 = vmatprep.subr.mxu0 0.0
        %1266 = vmatpush1.msra.mxu0 %v1072
        %1267 = vmatprep.subr.mxu0 0.0
        %1268 = vmatpush1.msra.mxu0 %v1077
        %1269 = vmatprep.subr.mxu0 0.0
        %1270 = vmatpush1.msra.mxu0 %v1082
        %1271 = vmatprep.subr.mxu0 0.0
        %1272 = vmatpush1.msra.mxu0 %v1087
        %1273 = vmatprep.subr.mxu0 0.0
        %1274 = vmatpush1.msra.mxu0 %v1092
        %1275 = vmatprep.subr.mxu0 0.0
        %1276 = vmatpush1.msra.mxu0 %v1097
        %1277 = vmatprep.subr.mxu0 0.0
        %1278 = vmatpush1.msra.mxu0 0.0
        %1279 = vmatprep.subr.mxu0 0.0
        %1280 = vmatpush1.msra.mxu0 0.0
        %1281 = vmatprep.subr.mxu0 0.0
        %1282 = vmatpush1.msra.mxu0 0.0
        %1283 = vmatprep.subr.mxu0 0.0
        %1284 = vmatpush1.msra.mxu0 0.0
        %1285 = vmatprep.subr.mxu0 0.0
        %1286 = vmatpush1.msra.mxu0 0.0
        %1287 = vmatprep.subr.mxu0 0.0
        %1288 = vmatpush1.msra.mxu0 0.0
        %1289 = vmatprep.subr.mxu0 0.0
        %1290 = vmatpush1.msra.mxu0 0.0
        %1291 = vmatprep.subr.mxu0 0.0
        %1292 = vmatpush1.msra.mxu0 0.0
        %1293 = vmatprep.subr.mxu0 0.0
        %1294 = vmatpush1.msra.mxu0 0.0
        %1295 = vmatprep.subr.mxu0 0.0
        %1296 = vmatpush1.msra.mxu0 0.0
        %1297 = vmatprep.subr.mxu0 0.0
        %1298 = vmatpush1.msra.mxu0 0.0
        %1299 = vmatprep.subr.mxu0 0.0
        %1300 = vmatpush1.msra.mxu0 0.0
        %1301 = vmatprep.subr.mxu0 0.0
        %1302 = vmatpush1.msra.mxu0 0.0
        %1303 = vmatprep.subr.mxu0 0.0
        %1304 = vmatpush1.msra.mxu0 0.0
        %1305 = vmatprep.subr.mxu0 0.0
        %1306 = vmatpush1.msra.mxu0 0.0
        %1307 = vmatprep.subr.mxu0 0.0
        %1308 = vmatpush1.msra.mxu0 0.0
        %1309 = vmatprep.mubr.f32.mxu0 0.0
        %1310 = vmatmul.mubr.f32.gmra.mrb[0].mxu0 %v827
        %v1311 = vpop.f32.mrb[0].mxu0
        %v1312 = vadd.f32 0.0, %v1311
        %v1313 = vpop.f32.mrb[0].mxu0
        %1314 = vmatprep.mubr.f32.mxu0 0.0
        %1315 = vmatmul.mubr.f32.gmra.mrb[0].mxu0 %v828
        %v1316 = vpop.f32.mrb[0].mxu0
        %v1317 = vadd.f32 0.0, %v1316
        %v1318 = vpop.f32.mrb[0].mxu0
        %1319 = vmatprep.mubr.f32.mxu0 0.0
        %1320 = vmatmul.mubr.f32.gmra.mrb[0].mxu0 %v829
        %v1321 = vpop.f32.mrb[0].mxu0
        %v1322 = vadd.f32 0.0, %v1321
        %v1323 = vpop.f32.mrb[0].mxu0
        %1324 = vmatprep.mubr.f32.mxu0 0.0
        %1325 = vmatmul.mubr.f32.gmra.mrb[0].mxu0 %v830
        %v1326 = vpop.f32.mrb[0].mxu0
        %v1327 = vadd.f32 0.0, %v1326
        %v1328 = vpop.f32.mrb[0].mxu0
        %1329 = vmatprep.mubr.f32.mxu0 0.0
        %1330 = vmatmul.mubr.f32.gmra.mrb[0].mxu0 %v831
        %v1331 = vpop.f32.mrb[0].mxu0
        %v1332 = vadd.f32 0.0, %v1331
        %v1333 = vpop.f32.mrb[0].mxu0
        %1334 = vmatprep.mubr.f32.mxu0 0.0
        %1335 = vmatmul.mubr.f32.gmra.mrb[0].mxu0 %v832
        %v1336 = vpop.f32.mrb[0].mxu0
        %v1337 = vadd.f32 0.0, %v1336
        %v1338 = vpop.f32.mrb[0].mxu0
        %1339 = vmatprep.mubr.f32.mxu0 0.0
        %1340 = vmatmul.mubr.f32.gmra.mrb[0].mxu0 %v833
        %v1341 = vpop.f32.mrb[0].mxu0
        %v1342 = vadd.f32 0.0, %v1341
        %v1343 = vpop.f32.mrb[0].mxu0
        %1344 = vmatprep.mubr.f32.mxu0 0.0
        %1345 = vmatmul.mubr.f32.gmra.mrb[0].mxu0 %v834
        %v1346 = vpop.f32.mrb[0].mxu0
        %v1347 = vadd.f32 0.0, %v1346
        %v1348 = vpop.f32.mrb[0].mxu0
        %1349 = vmatprep.mubr.f32.mxu0 0.0
        %1350 = vmatmul.mubr.f32.gmra.mrb[0].mxu0 %v835
        %v1351 = vpop.f32.mrb[0].mxu0
        %v1352 = vadd.f32 0.0, %v1351
        %v1353 = vpop.f32.mrb[0].mxu0
        %1354 = vmatprep.mubr.f32.mxu0 0.0
        %1355 = vmatmul.mubr.f32.gmra.mrb[0].mxu0 %v836
        %v1356 = vpop.f32.mrb[0].mxu0
        %v1357 = vadd.f32 0.0, %v1356
        %v1358 = vpop.f32.mrb[0].mxu0
        %1359 = vmatprep.mubr.f32.mxu0 0.0
        %1360 = vmatmul.mubr.f32.gmra.mrb[0].mxu0 %v837
        %v1361 = vpop.f32.mrb[0].mxu0
        %v1362 = vadd.f32 0.0, %v1361
        %v1363 = vpop.f32.mrb[0].mxu0
        %1364 = vmatprep.mubr.f32.mxu0 0.0
        %1365 = vmatmul.mubr.f32.gmra.mrb[0].mxu0 %v838
        %v1366 = vpop.f32.mrb[0].mxu0
        %v1367 = vadd.f32 0.0, %v1366
        %v1368 = vpop.f32.mrb[0].mxu0
        %1369 = vmatprep.mubr.f32.mxu0 0.0
        %1370 = vmatmul.mubr.f32.gmra.mrb[0].mxu0 %v839
        %v1371 = vpop.f32.mrb[0].mxu0
        %v1372 = vadd.f32 0.0, %v1371
        %v1373 = vpop.f32.mrb[0].mxu0
        %1374 = vmatprep.mubr.f32.mxu0 0.0
        %1375 = vmatmul.mubr.f32.gmra.mrb[0].mxu0 %v840
        %v1376 = vpop.f32.mrb[0].mxu0
        %v1377 = vadd.f32 0.0, %v1376
        %v1378 = vpop.f32.mrb[0].mxu0
        %1379 = vmatprep.mubr.f32.mxu0 0.0
        %1380 = vmatmul.mubr.f32.gmra.mrb[0].mxu0 %v841
        %v1381 = vpop.f32.mrb[0].mxu0
        %v1382 = vadd.f32 0.0, %v1381
        %v1383 = vpop.f32.mrb[0].mxu0
        %1384 = vmatprep.mubr.f32.mxu0 0.0
        %1385 = vmatmul.mubr.f32.gmra.mrb[0].mxu0 %v842
        %v1386 = vpop.f32.mrb[0].mxu0
        %v1387 = vadd.f32 0.0, %v1386
        %v1388 = vpop.f32.mrb[0].mxu0
        %1389 = vdwg.mxu0
        %1390 = vmatprep.subr.mxu0 0.0
        %1391 = vmatpush1.msra.mxu0 %v1167
        %1392 = vmatprep.subr.mxu0 0.0
        %1393 = vmatpush1.msra.mxu0 %v1172
        %1394 = vmatprep.subr.mxu0 0.0
        %1395 = vmatpush1.msra.mxu0 %v1177
        %1396 = vmatprep.subr.mxu0 0.0
        %1397 = vmatpush1.msra.mxu0 %v1182
        %1398 = vmatprep.subr.mxu0 0.0
        %1399 = vmatpush1.msra.mxu0 %v1187
        %1400 = vmatprep.subr.mxu0 0.0
        %1401 = vmatpush1.msra.mxu0 %v1192
        %1402 = vmatprep.subr.mxu0 0.0
        %1403 = vmatpush1.msra.mxu0 %v1197
        %1404 = vmatprep.subr.mxu0 0.0
        %1405 = vmatpush1.msra.mxu0 %v1202
        %1406 = vmatprep.subr.mxu0 0.0
        %1407 = vmatpush1.msra.mxu0 %v1207
        %1408 = vmatprep.subr.mxu0 0.0
        %1409 = vmatpush1.msra.mxu0 %v1212
        %1410 = vmatprep.subr.mxu0 0.0
        %1411 = vmatpush1.msra.mxu0 %v1217
        %1412 = vmatprep.subr.mxu0 0.0
        %1413 = vmatpush1.msra.mxu0 %v1222
        %1414 = vmatprep.subr.mxu0 0.0
        %1415 = vmatpush1.msra.mxu0 %v1227
        %1416 = vmatprep.subr.mxu0 0.0
        %1417 = vmatpush1.msra.mxu0 %v1232
        %1418 = vmatprep.subr.mxu0 0.0
        %1419 = vmatpush1.msra.mxu0 %v1237
        %1420 = vmatprep.subr.mxu0 0.0
        %1421 = vmatpush1.msra.mxu0 %v1242
        %1422 = vmatprep.subr.mxu0 0.0
        %1423 = vmatpush1.msra.mxu0 0.0
        %1424 = vmatprep.subr.mxu0 0.0
        %1425 = vmatpush1.msra.mxu0 0.0
        %1426 = vmatprep.subr.mxu0 0.0
        %1427 = vmatpush1.msra.mxu0 0.0
        %1428 = vmatprep.subr.mxu0 0.0
        %1429 = vmatpush1.msra.mxu0 0.0
        %1430 = vmatprep.subr.mxu0 0.0
        %1431 = vmatpush1.msra.mxu0 0.0
        %1432 = vmatprep.subr.mxu0 0.0
        %1433 = vmatpush1.msra.mxu0 0.0
        %1434 = vmatprep.subr.mxu0 0.0
        %1435 = vmatpush1.msra.mxu0 0.0
        %1436 = vmatprep.subr.mxu0 0.0
        %1437 = vmatpush1.msra.mxu0 0.0
        %1438 = vmatprep.subr.mxu0 0.0
        %1439 = vmatpush1.msra.mxu0 0.0
        %1440 = vmatprep.subr.mxu0 0.0
        %1441 = vmatpush1.msra.mxu0 0.0
        %1442 = vmatprep.subr.mxu0 0.0
        %1443 = vmatpush1.msra.mxu0 0.0
        %1444 = vmatprep.subr.mxu0 0.0
        %1445 = vmatpush1.msra.mxu0 0.0
        %1446 = vmatprep.subr.mxu0 0.0
        %1447 = vmatpush1.msra.mxu0 0.0
        %1448 = vmatprep.subr.mxu0 0.0
        %1449 = vmatpush1.msra.mxu0 0.0
        %1450 = vmatprep.subr.mxu0 0.0
        %1451 = vmatpush1.msra.mxu0 0.0
        %1452 = vmatprep.subr.mxu0 0.0
        %1453 = vmatpush1.msra.mxu0 0.0
        %1454 = vmatprep.mubr.f32.mxu0 0.0
        %1455 = vmatmul.mubr.f32.gmra.mrb[0].mxu0 %v843
        %v1456 = vpop.f32.mrb[0].mxu0
        %v1457 = vadd.f32 0.0, %v1456
        %v1458 = vpop.f32.mrb[0].mxu0
        %1459 = vmatprep.mubr.f32.mxu0 0.0
        %1460 = vmatmul.mubr.f32.gmra.mrb[0].mxu0 %v844
        %v1461 = vpop.f32.mrb[0].mxu0
        %v1462 = vadd.f32 0.0, %v1461
        %v1463 = vpop.f32.mrb[0].mxu0
        %1464 = vmatprep.mubr.f32.mxu0 0.0
        %1465 = vmatmul.mubr.f32.gmra.mrb[0].mxu0 %v845
        %v1466 = vpop.f32.mrb[0].mxu0
        %v1467 = vadd.f32 0.0, %v1466
        %v1468 = vpop.f32.mrb[0].mxu0
        %1469 = vmatprep.mubr.f32.mxu0 0.0
        %1470 = vmatmul.mubr.f32.gmra.mrb[0].mxu0 %v846
        %v1471 = vpop.f32.mrb[0].mxu0
        %v1472 = vadd.f32 0.0, %v1471
        %v1473 = vpop.f32.mrb[0].mxu0
        %1474 = vmatprep.mubr.f32.mxu0 0.0
        %1475 = vmatmul.mubr.f32.gmra.mrb[0].mxu0 %v847
        %v1476 = vpop.f32.mrb[0].mxu0
        %v1477 = vadd.f32 0.0, %v1476
        %v1478 = vpop.f32.mrb[0].mxu0
        %1479 = vmatprep.mubr.f32.mxu0 0.0
        %1480 = vmatmul.mubr.f32.gmra.mrb[0].mxu0 %v848
        %v1481 = vpop.f32.mrb[0].mxu0
        %v1482 = vadd.f32 0.0, %v1481
        %v1483 = vpop.f32.mrb[0].mxu0
        %1484 = vmatprep.mubr.f32.mxu0 0.0
        %1485 = vmatmul.mubr.f32.gmra.mrb[0].mxu0 %v849
        %v1486 = vpop.f32.mrb[0].mxu0
        %v1487 = vadd.f32 0.0, %v1486
        %v1488 = vpop.f32.mrb[0].mxu0
        %1489 = vmatprep.mubr.f32.mxu0 0.0
        %1490 = vmatmul.mubr.f32.gmra.mrb[0].mxu0 %v850
        %v1491 = vpop.f32.mrb[0].mxu0
        %v1492 = vadd.f32 0.0, %v1491
        %v1493 = vpop.f32.mrb[0].mxu0
        %1494 = vmatprep.mubr.f32.mxu0 0.0
        %1495 = vmatmul.mubr.f32.gmra.mrb[0].mxu0 %v851
        %v1496 = vpop.f32.mrb[0].mxu0
        %v1497 = vadd.f32 0.0, %v1496
        %v1498 = vpop.f32.mrb[0].mxu0
        %1499 = vmatprep.mubr.f32.mxu0 0.0
        %1500 = vmatmul.mubr.f32.gmra.mrb[0].mxu0 %v852
        %v1501 = vpop.f32.mrb[0].mxu0
        %v1502 = vadd.f32 0.0, %v1501
        %v1503 = vpop.f32.mrb[0].mxu0
        %1504 = vmatprep.mubr.f32.mxu0 0.0
        %1505 = vmatmul.mubr.f32.gmra.mrb[0].mxu0 %v853
        %v1506 = vpop.f32.mrb[0].mxu0
        %v1507 = vadd.f32 0.0, %v1506
        %v1508 = vpop.f32.mrb[0].mxu0
        %1509 = vmatprep.mubr.f32.mxu0 0.0
        %1510 = vmatmul.mubr.f32.gmra.mrb[0].mxu0 %v854
        %v1511 = vpop.f32.mrb[0].mxu0
        %v1512 = vadd.f32 0.0, %v1511
        %v1513 = vpop.f32.mrb[0].mxu0
        %1514 = vmatprep.mubr.f32.mxu0 0.0
        %1515 = vmatmul.mubr.f32.gmra.mrb[0].mxu0 %v855
        %v1516 = vpop.f32.mrb[0].mxu0
        %v1517 = vadd.f32 0.0, %v1516
        %v1518 = vpop.f32.mrb[0].mxu0
        %1519 = vmatprep.mubr.f32.mxu0 0.0
        %1520 = vmatmul.mubr.f32.gmra.mrb[0].mxu0 %v856
        %v1521 = vpop.f32.mrb[0].mxu0
        %v1522 = vadd.f32 0.0, %v1521
        %v1523 = vpop.f32.mrb[0].mxu0
        %1524 = vmatprep.mubr.f32.mxu0 0.0
        %1525 = vmatmul.mubr.f32.gmra.mrb[0].mxu0 %v857
        %v1526 = vpop.f32.mrb[0].mxu0
        %v1527 = vadd.f32 0.0, %v1526
        %v1528 = vpop.f32.mrb[0].mxu0
        %1529 = vmatprep.mubr.f32.mxu0 0.0
        %1530 = vmatmul.mubr.f32.gmra.mrb[0].mxu0 %v858
        %v1531 = vpop.f32.mrb[0].mxu0
        %v1532 = vadd.f32 0.0, %v1531
        %v1533 = vpop.f32.mrb[0].mxu0
        %1534 = vdwg.mxu0
        %vm1535 = vcmask 523264
        %v1537 = vsel %vm1535, %v1312, 0
        %v1540 = vsel %vm1535, %v1317, 0
        %v1543 = vsel %vm1535, %v1322, 0
        %v1546 = vsel %vm1535, %v1327, 0
        %v1549 = vsel %vm1535, %v1332, 0
        %v1552 = vsel %vm1535, %v1337, 0
        %v1555 = vsel %vm1535, %v1342, 0
        %v1558 = vsel %vm1535, %v1347, 0
        %v1561 = vsel %vm1535, %v1352, 0
        %v1564 = vsel %vm1535, %v1357, 0
        %v1567 = vsel %vm1535, %v1362, 0
        %v1570 = vsel %vm1535, %v1367, 0
        %v1573 = vsel %vm1535, %v1372, 0
        %v1576 = vsel %vm1535, %v1377, 0
        %v1579 = vsel %vm1535, %v1382, 0
        %v1582 = vsel %vm1535, %v1387, 0
        %1584 = vmatprep.subr.mxu0 0.0
        %1585 = vmatpush1.msra.mxu0 %v939
        %1586 = vmatprep.subr.mxu0 0.0
        %1587 = vmatpush1.msra.mxu0 %v940
        %1588 = vmatprep.subr.mxu0 0.0
        %1589 = vmatpush1.msra.mxu0 %v941
        %1590 = vmatprep.subr.mxu0 0.0
        %1591 = vmatpush1.msra.mxu0 %v942
        %1592 = vmatprep.subr.mxu0 0.0
        %1593 = vmatpush1.msra.mxu0 %v943
        %1594 = vmatprep.subr.mxu0 0.0
        %1595 = vmatpush1.msra.mxu0 %v944
        %1596 = vmatprep.subr.mxu0 0.0
        %1597 = vmatpush1.msra.mxu0 %v945
        %1598 = vmatprep.subr.mxu0 0.0
        %1599 = vmatpush1.msra.mxu0 %v946
        %1600 = vmatprep.subr.mxu0 0.0
        %1601 = vmatpush1.msra.mxu0 0.0
        %1602 = vmatprep.subr.mxu0 0.0
        %1603 = vmatpush1.msra.mxu0 0.0
        %1604 = vmatprep.subr.mxu0 0.0
        %1605 = vmatpush1.msra.mxu0 0.0
        %1606 = vmatprep.subr.mxu0 0.0
        %1607 = vmatpush1.msra.mxu0 0.0
        %1608 = vmatprep.subr.mxu0 0.0
        %1609 = vmatpush1.msra.mxu0 0.0
        %1610 = vmatprep.subr.mxu0 0.0
        %1611 = vmatpush1.msra.mxu0 0.0
        %1612 = vmatprep.subr.mxu0 0.0
        %1613 = vmatpush1.msra.mxu0 0.0
        %1614 = vmatprep.subr.mxu0 0.0
        %1615 = vmatpush1.msra.mxu0 0.0
        %1616 = vmatprep.subr.mxu0 0.0
        %1617 = vmatpush1.msra.mxu0 0.0
        %1618 = vmatprep.subr.mxu0 0.0
        %1619 = vmatpush1.msra.mxu0 0.0
        %1620 = vmatprep.subr.mxu0 0.0
        %1621 = vmatpush1.msra.mxu0 0.0
        %1622 = vmatprep.subr.mxu0 0.0
        %1623 = vmatpush1.msra.mxu0 0.0
        %1624 = vmatprep.subr.mxu0 0.0
        %1625 = vmatpush1.msra.mxu0 0.0
        %1626 = vmatprep.subr.mxu0 0.0
        %1627 = vmatpush1.msra.mxu0 0.0
        %1628 = vmatprep.subr.mxu0 0.0
        %1629 = vmatpush1.msra.mxu0 0.0
        %1630 = vmatprep.subr.mxu0 0.0
        %1631 = vmatpush1.msra.mxu0 0.0
        %1632 = vmatprep.subr.mxu0 0.0
        %1633 = vmatpush1.msra.mxu0 0.0
        %1634 = vmatprep.subr.mxu0 0.0
        %1635 = vmatpush1.msra.mxu0 0.0
        %1636 = vmatprep.subr.mxu0 0.0
        %1637 = vmatpush1.msra.mxu0 0.0
        %1638 = vmatprep.subr.mxu0 0.0
        %1639 = vmatpush1.msra.mxu0 0.0
        %1640 = vmatprep.subr.mxu0 0.0
        %1641 = vmatpush1.msra.mxu0 0.0
        %1642 = vmatprep.subr.mxu0 0.0
        %1643 = vmatpush1.msra.mxu0 0.0
        %1644 = vmatprep.subr.mxu0 0.0
        %1645 = vmatpush1.msra.mxu0 0.0
        %1646 = vmatprep.subr.mxu0 0.0
        %1647 = vmatpush1.msra.mxu0 0.0
        %1648 = vmatprep.mubr.f32.mxu0 0.0
        %1649 = vmatmul.mubr.f32.gmra.mrb[0].mxu0 %v1537
        %v1650 = vpop.f32.mrb[0].mxu0
        %v1651 = vadd.f32 0.0, %v1650
        %v1652 = vpop.f32.mrb[0].mxu0
        %1653 = vmatprep.mubr.f32.mxu0 0.0
        %1654 = vmatmul.mubr.f32.gmra.mrb[0].mxu0 %v1540
        %v1655 = vpop.f32.mrb[0].mxu0
        %v1656 = vadd.f32 0.0, %v1655
        %v1657 = vpop.f32.mrb[0].mxu0
        %1658 = vmatprep.mubr.f32.mxu0 0.0
        %1659 = vmatmul.mubr.f32.gmra.mrb[0].mxu0 %v1543
        %v1660 = vpop.f32.mrb[0].mxu0
        %v1661 = vadd.f32 0.0, %v1660
        %v1662 = vpop.f32.mrb[0].mxu0
        %1663 = vmatprep.mubr.f32.mxu0 0.0
        %1664 = vmatmul.mubr.f32.gmra.mrb[0].mxu0 %v1546
        %v1665 = vpop.f32.mrb[0].mxu0
        %v1666 = vadd.f32 0.0, %v1665
        %v1667 = vpop.f32.mrb[0].mxu0
        %1668 = vmatprep.mubr.f32.mxu0 0.0
        %1669 = vmatmul.mubr.f32.gmra.mrb[0].mxu0 %v1549
        %v1670 = vpop.f32.mrb[0].mxu0
        %v1671 = vadd.f32 0.0, %v1670
        %v1672 = vpop.f32.mrb[0].mxu0
        %1673 = vmatprep.mubr.f32.mxu0 0.0
        %1674 = vmatmul.mubr.f32.gmra.mrb[0].mxu0 %v1552
        %v1675 = vpop.f32.mrb[0].mxu0
        %v1676 = vadd.f32 0.0, %v1675
        %v1677 = vpop.f32.mrb[0].mxu0
        %1678 = vmatprep.mubr.f32.mxu0 0.0
        %1679 = vmatmul.mubr.f32.gmra.mrb[0].mxu0 %v1555
        %v1680 = vpop.f32.mrb[0].mxu0
        %v1681 = vadd.f32 0.0, %v1680
        %v1682 = vpop.f32.mrb[0].mxu0
        %1683 = vmatprep.mubr.f32.mxu0 0.0
        %1684 = vmatmul.mubr.f32.gmra.mrb[0].mxu0 %v1558
        %v1685 = vpop.f32.mrb[0].mxu0
        %v1686 = vadd.f32 0.0, %v1685
        %v1687 = vpop.f32.mrb[0].mxu0
        %1688 = vmatprep.mubr.f32.mxu0 0.0
        %1689 = vmatmul.mubr.f32.gmra.mrb[0].mxu0 %v1561
        %v1690 = vpop.f32.mrb[0].mxu0
        %v1691 = vadd.f32 0.0, %v1690
        %v1692 = vpop.f32.mrb[0].mxu0
        %1693 = vmatprep.mubr.f32.mxu0 0.0
        %1694 = vmatmul.mubr.f32.gmra.mrb[0].mxu0 %v1564
        %v1695 = vpop.f32.mrb[0].mxu0
        %v1696 = vadd.f32 0.0, %v1695
        %v1697 = vpop.f32.mrb[0].mxu0
        %1698 = vmatprep.mubr.f32.mxu0 0.0
        %1699 = vmatmul.mubr.f32.gmra.mrb[0].mxu0 %v1567
        %v1700 = vpop.f32.mrb[0].mxu0
        %v1701 = vadd.f32 0.0, %v1700
        %v1702 = vpop.f32.mrb[0].mxu0
        %1703 = vmatprep.mubr.f32.mxu0 0.0
        %1704 = vmatmul.mubr.f32.gmra.mrb[0].mxu0 %v1570
        %v1705 = vpop.f32.mrb[0].mxu0
        %v1706 = vadd.f32 0.0, %v1705
        %v1707 = vpop.f32.mrb[0].mxu0
        %1708 = vmatprep.mubr.f32.mxu0 0.0
        %1709 = vmatmul.mubr.f32.gmra.mrb[0].mxu0 %v1573
        %v1710 = vpop.f32.mrb[0].mxu0
        %v1711 = vadd.f32 0.0, %v1710
        %v1712 = vpop.f32.mrb[0].mxu0
        %1713 = vmatprep.mubr.f32.mxu0 0.0
        %1714 = vmatmul.mubr.f32.gmra.mrb[0].mxu0 %v1576
        %v1715 = vpop.f32.mrb[0].mxu0
        %v1716 = vadd.f32 0.0, %v1715
        %v1717 = vpop.f32.mrb[0].mxu0
        %1718 = vmatprep.mubr.f32.mxu0 0.0
        %1719 = vmatmul.mubr.f32.gmra.mrb[0].mxu0 %v1579
        %v1720 = vpop.f32.mrb[0].mxu0
        %v1721 = vadd.f32 0.0, %v1720
        %v1722 = vpop.f32.mrb[0].mxu0
        %1723 = vmatprep.mubr.f32.mxu0 0.0
        %1724 = vmatmul.mubr.f32.gmra.mrb[0].mxu0 %v1582
        %v1725 = vpop.f32.mrb[0].mxu0
        %v1726 = vadd.f32 0.0, %v1725
        %v1727 = vpop.f32.mrb[0].mxu0
        %1728 = vdwg.mxu0
        %v1730 = vsel %vm1535, %v1457, 0
        %v1733 = vsel %vm1535, %v1462, 0
        %v1736 = vsel %vm1535, %v1467, 0
        %v1739 = vsel %vm1535, %v1472, 0
        %v1742 = vsel %vm1535, %v1477, 0
        %v1745 = vsel %vm1535, %v1482, 0
        %v1748 = vsel %vm1535, %v1487, 0
        %v1751 = vsel %vm1535, %v1492, 0
        %v1754 = vsel %vm1535, %v1497, 0
        %v1757 = vsel %vm1535, %v1502, 0
        %v1760 = vsel %vm1535, %v1507, 0
        %v1763 = vsel %vm1535, %v1512, 0
        %v1766 = vsel %vm1535, %v1517, 0
        %v1769 = vsel %vm1535, %v1522, 0
        %v1772 = vsel %vm1535, %v1527, 0
        %v1775 = vsel %vm1535, %v1532, 0
        %1777 = vmatprep.subr.mxu0 0.0
        %1778 = vmatpush1.msra.mxu0 %v947
        %1779 = vmatprep.subr.mxu0 0.0
        %1780 = vmatpush1.msra.mxu0 %v948
        %1781 = vmatprep.subr.mxu0 0.0
        %1782 = vmatpush1.msra.mxu0 %v949
        %1783 = vmatprep.subr.mxu0 0.0
        %1784 = vmatpush1.msra.mxu0 %v950
        %1785 = vmatprep.subr.mxu0 0.0
        %1786 = vmatpush1.msra.mxu0 %v951
        %1787 = vmatprep.subr.mxu0 0.0
        %1788 = vmatpush1.msra.mxu0 %v952
        %1789 = vmatprep.subr.mxu0 0.0
        %1790 = vmatpush1.msra.mxu0 %v953
        %1791 = vmatprep.subr.mxu0 0.0
        %1792 = vmatpush1.msra.mxu0 %v954
        %1793 = vmatprep.subr.mxu0 0.0
        %1794 = vmatpush1.msra.mxu0 0.0
        %1795 = vmatprep.subr.mxu0 0.0
        %1796 = vmatpush1.msra.mxu0 0.0
        %1797 = vmatprep.subr.mxu0 0.0
        %1798 = vmatpush1.msra.mxu0 0.0
        %1799 = vmatprep.subr.mxu0 0.0
        %1800 = vmatpush1.msra.mxu0 0.0
        %1801 = vmatprep.subr.mxu0 0.0
        %1802 = vmatpush1.msra.mxu0 0.0
        %1803 = vmatprep.subr.mxu0 0.0
        %1804 = vmatpush1.msra.mxu0 0.0
        %1805 = vmatprep.subr.mxu0 0.0
        %1806 = vmatpush1.msra.mxu0 0.0
        %1807 = vmatprep.subr.mxu0 0.0
        %1808 = vmatpush1.msra.mxu0 0.0
        %1809 = vmatprep.subr.mxu0 0.0
        %1810 = vmatpush1.msra.mxu0 0.0
        %1811 = vmatprep.subr.mxu0 0.0
        %1812 = vmatpush1.msra.mxu0 0.0
        %1813 = vmatprep.subr.mxu0 0.0
        %1814 = vmatpush1.msra.mxu0 0.0
        %1815 = vmatprep.subr.mxu0 0.0
        %1816 = vmatpush1.msra.mxu0 0.0
        %1817 = vmatprep.subr.mxu0 0.0
        %1818 = vmatpush1.msra.mxu0 0.0
        %1819 = vmatprep.subr.mxu0 0.0
        %1820 = vmatpush1.msra.mxu0 0.0
        %1821 = vmatprep.subr.mxu0 0.0
        %1822 = vmatpush1.msra.mxu0 0.0
        %1823 = vmatprep.subr.mxu0 0.0
        %1824 = vmatpush1.msra.mxu0 0.0
        %1825 = vmatprep.subr.mxu0 0.0
        %1826 = vmatpush1.msra.mxu0 0.0
        %1827 = vmatprep.subr.mxu0 0.0
        %1828 = vmatpush1.msra.mxu0 0.0
        %1829 = vmatprep.subr.mxu0 0.0
        %1830 = vmatpush1.msra.mxu0 0.0
        %1831 = vmatprep.subr.mxu0 0.0
        %1832 = vmatpush1.msra.mxu0 0.0
        %1833 = vmatprep.subr.mxu0 0.0
        %1834 = vmatpush1.msra.mxu0 0.0
        %1835 = vmatprep.subr.mxu0 0.0
        %1836 = vmatpush1.msra.mxu0 0.0
        %1837 = vmatprep.subr.mxu0 0.0
        %1838 = vmatpush1.msra.mxu0 0.0
        %1839 = vmatprep.subr.mxu0 0.0
        %1840 = vmatpush1.msra.mxu0 0.0
        %1841 = vmatprep.mubr.f32.mxu0 0.0
        %1842 = vmatmul.mubr.f32.gmra.mrb[0].mxu0 %v1730
        %v1843 = vpop.f32.mrb[0].mxu0
        %v1844 = vadd.f32 0.0, %v1843
        %v1845 = vpop.f32.mrb[0].mxu0
        %1846 = vmatprep.mubr.f32.mxu0 0.0
        %1847 = vmatmul.mubr.f32.gmra.mrb[0].mxu0 %v1733
        %v1848 = vpop.f32.mrb[0].mxu0
        %v1849 = vadd.f32 0.0, %v1848
        %v1850 = vpop.f32.mrb[0].mxu0
        %1851 = vmatprep.mubr.f32.mxu0 0.0
        %1852 = vmatmul.mubr.f32.gmra.mrb[0].mxu0 %v1736
        %v1853 = vpop.f32.mrb[0].mxu0
        %v1854 = vadd.f32 0.0, %v1853
        %v1855 = vpop.f32.mrb[0].mxu0
        %1856 = vmatprep.mubr.f32.mxu0 0.0
        %1857 = vmatmul.mubr.f32.gmra.mrb[0].mxu0 %v1739
        %v1858 = vpop.f32.mrb[0].mxu0
        %v1859 = vadd.f32 0.0, %v1858
        %v1860 = vpop.f32.mrb[0].mxu0
        %1861 = vmatprep.mubr.f32.mxu0 0.0
        %1862 = vmatmul.mubr.f32.gmra.mrb[0].mxu0 %v1742
        %v1863 = vpop.f32.mrb[0].mxu0
        %v1864 = vadd.f32 0.0, %v1863
        %v1865 = vpop.f32.mrb[0].mxu0
        %1866 = vmatprep.mubr.f32.mxu0 0.0
        %1867 = vmatmul.mubr.f32.gmra.mrb[0].mxu0 %v1745
        %v1868 = vpop.f32.mrb[0].mxu0
        %v1869 = vadd.f32 0.0, %v1868
        %v1870 = vpop.f32.mrb[0].mxu0
        %1871 = vmatprep.mubr.f32.mxu0 0.0
        %1872 = vmatmul.mubr.f32.gmra.mrb[0].mxu0 %v1748
        %v1873 = vpop.f32.mrb[0].mxu0
        %v1874 = vadd.f32 0.0, %v1873
        %v1875 = vpop.f32.mrb[0].mxu0
        %1876 = vmatprep.mubr.f32.mxu0 0.0
        %1877 = vmatmul.mubr.f32.gmra.mrb[0].mxu0 %v1751
        %v1878 = vpop.f32.mrb[0].mxu0
        %v1879 = vadd.f32 0.0, %v1878
        %v1880 = vpop.f32.mrb[0].mxu0
        %1881 = vmatprep.mubr.f32.mxu0 0.0
        %1882 = vmatmul.mubr.f32.gmra.mrb[0].mxu0 %v1754
        %v1883 = vpop.f32.mrb[0].mxu0
        %v1884 = vadd.f32 0.0, %v1883
        %v1885 = vpop.f32.mrb[0].mxu0
        %1886 = vmatprep.mubr.f32.mxu0 0.0
        %1887 = vmatmul.mubr.f32.gmra.mrb[0].mxu0 %v1757
        %v1888 = vpop.f32.mrb[0].mxu0
        %v1889 = vadd.f32 0.0, %v1888
        %v1890 = vpop.f32.mrb[0].mxu0
        %1891 = vmatprep.mubr.f32.mxu0 0.0
        %1892 = vmatmul.mubr.f32.gmra.mrb[0].mxu0 %v1760
        %v1893 = vpop.f32.mrb[0].mxu0
        %v1894 = vadd.f32 0.0, %v1893
        %v1895 = vpop.f32.mrb[0].mxu0
        %1896 = vmatprep.mubr.f32.mxu0 0.0
        %1897 = vmatmul.mubr.f32.gmra.mrb[0].mxu0 %v1763
        %v1898 = vpop.f32.mrb[0].mxu0
        %v1899 = vadd.f32 0.0, %v1898
        %v1900 = vpop.f32.mrb[0].mxu0
        %1901 = vmatprep.mubr.f32.mxu0 0.0
        %1902 = vmatmul.mubr.f32.gmra.mrb[0].mxu0 %v1766
        %v1903 = vpop.f32.mrb[0].mxu0
        %v1904 = vadd.f32 0.0, %v1903
        %v1905 = vpop.f32.mrb[0].mxu0
        %1906 = vmatprep.mubr.f32.mxu0 0.0
        %1907 = vmatmul.mubr.f32.gmra.mrb[0].mxu0 %v1769
        %v1908 = vpop.f32.mrb[0].mxu0
        %v1909 = vadd.f32 0.0, %v1908
        %v1910 = vpop.f32.mrb[0].mxu0
        %1911 = vmatprep.mubr.f32.mxu0 0.0
        %1912 = vmatmul.mubr.f32.gmra.mrb[0].mxu0 %v1772
        %v1913 = vpop.f32.mrb[0].mxu0
        %v1914 = vadd.f32 0.0, %v1913
        %v1915 = vpop.f32.mrb[0].mxu0
        %1916 = vmatprep.mubr.f32.mxu0 0.0
        %1917 = vmatmul.mubr.f32.gmra.mrb[0].mxu0 %v1775
        %v1918 = vpop.f32.mrb[0].mxu0
        %v1919 = vadd.f32 0.0, %v1918
        %v1920 = vpop.f32.mrb[0].mxu0
        %1921 = vdwg.mxu0
        %v1922 = vadd.f32 %v1651, %v1844
        %v1923 = vadd.f32 %v1656, %v1849
        %v1924 = vadd.f32 %v1661, %v1854
        %v1925 = vadd.f32 %v1666, %v1859
        %v1926 = vadd.f32 %v1671, %v1864
        %v1927 = vadd.f32 %v1676, %v1869
        %v1928 = vadd.f32 %v1681, %v1874
        %v1929 = vadd.f32 %v1686, %v1879
        %v1930 = vadd.f32 %v1691, %v1884
        %v1931 = vadd.f32 %v1696, %v1889
        %v1932 = vadd.f32 %v1701, %v1894
        %v1933 = vadd.f32 %v1706, %v1899
        %v1934 = vadd.f32 %v1711, %v1904
        %v1935 = vadd.f32 %v1716, %v1909
        %v1936 = vadd.f32 %v1721, %v1914
        %v1937 = vadd.f32 %v1726, %v1919
        %v1938 = vld [vmem:[%s390] sm:$0xff]
        %v1939 = vld [vmem:[%s390 + $0x8] sm:$0xff]
        %v1940 = vld [vmem:[%s390 + $0x10] sm:$0xff]
        %v1941 = vld [vmem:[%s390 + $0x18] sm:$0xff]
        %v1942 = vld [vmem:[%s390 + $0x20] sm:$0xff]
        %v1943 = vld [vmem:[%s390 + $0x28] sm:$0xff]
        %v1944 = vld [vmem:[%s390 + $0x30] sm:$0xff]
        %v1945 = vld [vmem:[%s390 + $0x38] sm:$0xff]
        %v1946 = vld [vmem:[%s390 + $0x40] sm:$0xff]
        %v1947 = vld [vmem:[%s390 + $0x48] sm:$0xff]
        %v1948 = vld [vmem:[%s390 + $0x50] sm:$0xff]
        %v1949 = vld [vmem:[%s390 + $0x58] sm:$0xff]
        %v1950 = vld [vmem:[%s390 + $0x60] sm:$0xff]
        %v1951 = vld [vmem:[%s390 + $0x68] sm:$0xff]
        %v1952 = vld [vmem:[%s390 + $0x70] sm:$0xff]
        %v1953 = vld [vmem:[%s390 + $0x78] sm:$0xff]
        %v1954 = vadd.f32 %v1922, %v1938
        %v1955 = vadd.f32 %v1923, %v1939
        %v1956 = vadd.f32 %v1924, %v1940
        %v1957 = vadd.f32 %v1925, %v1941
        %v1958 = vadd.f32 %v1926, %v1942
        %v1959 = vadd.f32 %v1927, %v1943
        %v1960 = vadd.f32 %v1928, %v1944
        %v1961 = vadd.f32 %v1929, %v1945
        %v1962 = vadd.f32 %v1930, %v1946
        %v1963 = vadd.f32 %v1931, %v1947
        %v1964 = vadd.f32 %v1932, %v1948
        %v1965 = vadd.f32 %v1933, %v1949
        %v1966 = vadd.f32 %v1934, %v1950
        %v1967 = vadd.f32 %v1935, %v1951
        %v1968 = vadd.f32 %v1936, %v1952
        %v1969 = vadd.f32 %v1937, %v1953
        %1970 = vadd.xlane.f32.xlu0 %v1954
        %v1971 = vpop.xlane.xlu0 %1970
        %1972 = vadd.xlane.f32.xlu0 %v1955
        %v1973 = vpop.xlane.xlu0 %1972
        %1974 = vadd.xlane.f32.xlu0 %v1956
        %v1975 = vpop.xlane.xlu0 %1974
        %1976 = vadd.xlane.f32.xlu0 %v1957
        %v1977 = vpop.xlane.xlu0 %1976
        %1978 = vadd.xlane.f32.xlu0 %v1958
        %v1979 = vpop.xlane.xlu0 %1978
        %1980 = vadd.xlane.f32.xlu0 %v1959
        %v1981 = vpop.xlane.xlu0 %1980
        %1982 = vadd.xlane.f32.xlu0 %v1960
        %v1983 = vpop.xlane.xlu0 %1982
        %1984 = vadd.xlane.f32.xlu0 %v1961
        %v1985 = vpop.xlane.xlu0 %1984
        %1986 = vadd.xlane.f32.xlu0 %v1962
        %v1987 = vpop.xlane.xlu0 %1986
        %1988 = vadd.xlane.f32.xlu0 %v1963
        %v1989 = vpop.xlane.xlu0 %1988
        %1990 = vadd.xlane.f32.xlu0 %v1964
        %v1991 = vpop.xlane.xlu0 %1990
        %1992 = vadd.xlane.f32.xlu0 %v1965
        %v1993 = vpop.xlane.xlu0 %1992
        %1994 = vadd.xlane.f32.xlu0 %v1966
        %v1995 = vpop.xlane.xlu0 %1994
        %1996 = vadd.xlane.f32.xlu0 %v1967
        %v1997 = vpop.xlane.xlu0 %1996
        %1998 = vadd.xlane.f32.xlu0 %v1968
        %v1999 = vpop.xlane.xlu0 %1998
        %2000 = vadd.xlane.f32.xlu0 %v1969
        %v2001 = vpop.xlane.xlu0 %2000
        %v2002 = vrcp.pop 128.0
        %v2003 = vmul.f32 %v1971, %v2002
        %v2004 = vmul.f32 %v1973, %v2002
        %v2005 = vmul.f32 %v1975, %v2002
        %v2006 = vmul.f32 %v1977, %v2002
        %v2007 = vmul.f32 %v1979, %v2002
        %v2008 = vmul.f32 %v1981, %v2002
        %v2009 = vmul.f32 %v1983, %v2002
        %v2010 = vmul.f32 %v1985, %v2002
        %v2011 = vmul.f32 %v1987, %v2002
        %v2012 = vmul.f32 %v1989, %v2002
        %v2013 = vmul.f32 %v1991, %v2002
        %v2014 = vmul.f32 %v1993, %v2002
        %v2015 = vmul.f32 %v1995, %v2002
        %v2016 = vmul.f32 %v1997, %v2002
        %v2017 = vmul.f32 %v1999, %v2002
        %v2018 = vmul.f32 %v2001, %v2002
        %v2019 = vsub.f32 %v1954, %v2003
        %v2020 = vsub.f32 %v1955, %v2004
        %v2021 = vsub.f32 %v1956, %v2005
        %v2022 = vsub.f32 %v1957, %v2006
        %v2023 = vsub.f32 %v1958, %v2007
        %v2024 = vsub.f32 %v1959, %v2008
        %v2025 = vsub.f32 %v1960, %v2009
        %v2026 = vsub.f32 %v1961, %v2010
        %v2027 = vsub.f32 %v1962, %v2011
        %v2028 = vsub.f32 %v1963, %v2012
        %v2029 = vsub.f32 %v1964, %v2013
        %v2030 = vsub.f32 %v1965, %v2014
        %v2031 = vsub.f32 %v1966, %v2015
        %v2032 = vsub.f32 %v1967, %v2016
        %v2033 = vsub.f32 %v1968, %v2017
        %v2034 = vsub.f32 %v1969, %v2018
        %v2035 = vmul.f32 %v2019, %v2019
        %v2036 = vmul.f32 %v2020, %v2020
        %v2037 = vmul.f32 %v2021, %v2021
        %v2038 = vmul.f32 %v2022, %v2022
        %v2039 = vmul.f32 %v2023, %v2023
        %v2040 = vmul.f32 %v2024, %v2024
        %v2041 = vmul.f32 %v2025, %v2025
        %v2042 = vmul.f32 %v2026, %v2026
        %v2043 = vmul.f32 %v2027, %v2027
        %v2044 = vmul.f32 %v2028, %v2028
        %v2045 = vmul.f32 %v2029, %v2029
        %v2046 = vmul.f32 %v2030, %v2030
        %v2047 = vmul.f32 %v2031, %v2031
        %v2048 = vmul.f32 %v2032, %v2032
        %v2049 = vmul.f32 %v2033, %v2033
        %v2050 = vmul.f32 %v2034, %v2034
        %2051 = vadd.xlane.f32.xlu0 %v2035
        %v2052 = vpop.xlane.xlu0 %2051
        %2053 = vadd.xlane.f32.xlu0 %v2036
        %v2054 = vpop.xlane.xlu0 %2053
        %2055 = vadd.xlane.f32.xlu0 %v2037
        %v2056 = vpop.xlane.xlu0 %2055
        %2057 = vadd.xlane.f32.xlu0 %v2038
        %v2058 = vpop.xlane.xlu0 %2057
        %2059 = vadd.xlane.f32.xlu0 %v2039
        %v2060 = vpop.xlane.xlu0 %2059
        %2061 = vadd.xlane.f32.xlu0 %v2040
        %v2062 = vpop.xlane.xlu0 %2061
        %2063 = vadd.xlane.f32.xlu0 %v2041
        %v2064 = vpop.xlane.xlu0 %2063
        %2065 = vadd.xlane.f32.xlu0 %v2042
        %v2066 = vpop.xlane.xlu0 %2065
        %2067 = vadd.xlane.f32.xlu0 %v2043
        %v2068 = vpop.xlane.xlu0 %2067
        %2069 = vadd.xlane.f32.xlu0 %v2044
        %v2070 = vpop.xlane.xlu0 %2069
        %2071 = vadd.xlane.f32.xlu0 %v2045
        %v2072 = vpop.xlane.xlu0 %2071
        %2073 = vadd.xlane.f32.xlu0 %v2046
        %v2074 = vpop.xlane.xlu0 %2073
        %2075 = vadd.xlane.f32.xlu0 %v2047
        %v2076 = vpop.xlane.xlu0 %2075
        %2077 = vadd.xlane.f32.xlu0 %v2048
        %v2078 = vpop.xlane.xlu0 %2077
        %2079 = vadd.xlane.f32.xlu0 %v2049
        %v2080 = vpop.xlane.xlu0 %2079
        %2081 = vadd.xlane.f32.xlu0 %v2050
        %v2082 = vpop.xlane.xlu0 %2081
        %v2083 = vmul.f32 %v2052, %v2002
        %v2084 = vmul.f32 %v2054, %v2002
        %v2085 = vmul.f32 %v2056, %v2002
        %v2086 = vmul.f32 %v2058, %v2002
        %v2087 = vmul.f32 %v2060, %v2002
        %v2088 = vmul.f32 %v2062, %v2002
        %v2089 = vmul.f32 %v2064, %v2002
        %v2090 = vmul.f32 %v2066, %v2002
        %v2091 = vmul.f32 %v2068, %v2002
        %v2092 = vmul.f32 %v2070, %v2002
        %v2093 = vmul.f32 %v2072, %v2002
        %v2094 = vmul.f32 %v2074, %v2002
        %v2095 = vmul.f32 %v2076, %v2002
        %v2096 = vmul.f32 %v2078, %v2002
        %v2097 = vmul.f32 %v2080, %v2002
        %v2098 = vmul.f32 %v2082, %v2002
        %v2099 = vadd.f32 %v2083, 1e-06
        %v2100 = vadd.f32 %v2084, 1e-06
        %v2101 = vadd.f32 %v2085, 1e-06
        %v2102 = vadd.f32 %v2086, 1e-06
        %v2103 = vadd.f32 %v2087, 1e-06
        %v2104 = vadd.f32 %v2088, 1e-06
        %v2105 = vadd.f32 %v2089, 1e-06
        %v2106 = vadd.f32 %v2090, 1e-06
        %v2107 = vadd.f32 %v2091, 1e-06
        %v2108 = vadd.f32 %v2092, 1e-06
        %v2109 = vadd.f32 %v2093, 1e-06
        %v2110 = vadd.f32 %v2094, 1e-06
        %v2111 = vadd.f32 %v2095, 1e-06
        %v2112 = vadd.f32 %v2096, 1e-06
        %v2113 = vadd.f32 %v2097, 1e-06
        %v2114 = vadd.f32 %v2098, 1e-06
        %v2115 = vrsqrt.pop %v2099
        %v2116 = vrsqrt.pop %v2100
        %v2117 = vrsqrt.pop %v2101
        %v2118 = vrsqrt.pop %v2102
        %v2119 = vrsqrt.pop %v2103
        %v2120 = vrsqrt.pop %v2104
        %v2121 = vrsqrt.pop %v2105
        %v2122 = vrsqrt.pop %v2106
        %v2123 = vrsqrt.pop %v2107
        %v2124 = vrsqrt.pop %v2108
        %v2125 = vrsqrt.pop %v2109
        %v2126 = vrsqrt.pop %v2110
        %v2127 = vrsqrt.pop %v2111
        %v2128 = vrsqrt.pop %v2112
        %v2129 = vrsqrt.pop %v2113
        %v2130 = vrsqrt.pop %v2114
        %v2131 = vmul.f32 %v2019, %v2115
        %v2132 = vmul.f32 %v2020, %v2116
        %v2133 = vmul.f32 %v2021, %v2117
        %v2134 = vmul.f32 %v2022, %v2118
        %v2135 = vmul.f32 %v2023, %v2119
        %v2136 = vmul.f32 %v2024, %v2120
        %v2137 = vmul.f32 %v2025, %v2121
        %v2138 = vmul.f32 %v2026, %v2122
        %v2139 = vmul.f32 %v2027, %v2123
        %v2140 = vmul.f32 %v2028, %v2124
        %v2141 = vmul.f32 %v2029, %v2125
        %v2142 = vmul.f32 %v2030, %v2126
        %v2143 = vmul.f32 %v2031, %v2127
        %v2144 = vmul.f32 %v2032, %v2128
        %v2145 = vmul.f32 %v2033, %v2129
        %v2146 = vmul.f32 %v2034, %v2130
        %v2147 = vld [vmem:[%s6] sm:$0x1]
        %v2149 = vlaneseq
        %v2150 = vshrl.u32 %v2149, 7
        %v2151 = vsub.s32 0, %v2150
        %v2152 = vrot.slane %v2147, %v2151
        %v2154 = vmul.f32 %v2131, %v2152
        %v2155 = vmul.f32 %v2132, %v2152
        %v2156 = vmul.f32 %v2133, %v2152
        %v2157 = vmul.f32 %v2134, %v2152
        %v2158 = vmul.f32 %v2135, %v2152
        %v2159 = vmul.f32 %v2136, %v2152
        %v2160 = vmul.f32 %v2137, %v2152
        %v2161 = vmul.f32 %v2138, %v2152
        %v2162 = vmul.f32 %v2139, %v2152
        %v2163 = vmul.f32 %v2140, %v2152
        %v2164 = vmul.f32 %v2141, %v2152
        %v2165 = vmul.f32 %v2142, %v2152
        %v2166 = vmul.f32 %v2143, %v2152
        %v2167 = vmul.f32 %v2144, %v2152
        %v2168 = vmul.f32 %v2145, %v2152
        %v2169 = vmul.f32 %v2146, %v2152
        %v2170 = vld [vmem:[%s7] sm:$0x1]
        %v2172 = vlaneseq
        %v2173 = vshrl.u32 %v2172, 7
        %v2174 = vsub.s32 0, %v2173
        %v2175 = vrot.slane %v2170, %v2174
        %v2177 = vadd.f32 %v2154, %v2175
        %v2178 = vadd.f32 %v2155, %v2175
        %v2179 = vadd.f32 %v2156, %v2175
        %v2180 = vadd.f32 %v2157, %v2175
        %v2181 = vadd.f32 %v2158, %v2175
        %v2182 = vadd.f32 %v2159, %v2175
        %v2183 = vadd.f32 %v2160, %v2175
        %v2184 = vadd.f32 %v2161, %v2175
        %v2185 = vadd.f32 %v2162, %v2175
        %v2186 = vadd.f32 %v2163, %v2175
        %v2187 = vadd.f32 %v2164, %v2175
        %v2188 = vadd.f32 %v2165, %v2175
        %v2189 = vadd.f32 %v2166, %v2175
        %v2190 = vadd.f32 %v2167, %v2175
        %v2191 = vadd.f32 %v2168, %v2175
        %v2192 = vadd.f32 %v2169, %v2175
        %2193 = vst [vmem:[%s446] sm:$0xff] %v2177
        %2194 = vst [vmem:[%s446 + $0x8] sm:$0xff] %v2178
        %2195 = vst [vmem:[%s446 + $0x10] sm:$0xff] %v2179
        %2196 = vst [vmem:[%s446 + $0x18] sm:$0xff] %v2180
        %2197 = vst [vmem:[%s446 + $0x20] sm:$0xff] %v2181
        %2198 = vst [vmem:[%s446 + $0x28] sm:$0xff] %v2182
        %2199 = vst [vmem:[%s446 + $0x30] sm:$0xff] %v2183
        %2200 = vst [vmem:[%s446 + $0x38] sm:$0xff] %v2184
        %2201 = vst [vmem:[%s446 + $0x40] sm:$0xff] %v2185
        %2202 = vst [vmem:[%s446 + $0x48] sm:$0xff] %v2186
        %2203 = vst [vmem:[%s446 + $0x50] sm:$0xff] %v2187
        %2204 = vst [vmem:[%s446 + $0x58] sm:$0xff] %v2188
        %2205 = vst [vmem:[%s446 + $0x60] sm:$0xff] %v2189
        %2206 = vst [vmem:[%s446 + $0x68] sm:$0xff] %v2190
        %2207 = vst [vmem:[%s446 + $0x70] sm:$0xff] %v2191
        %2208 = vst [vmem:[%s446 + $0x78] sm:$0xff] %v2192
        %s2209 = sand.u32 %s229, 1
        %s2210 = scalar_lea.sflag [#allocation4], %s2209
        %s2211 = sand.u32 %s229, 1
        %s2212 = smul.addr %s2211, 128
        %s2213 = scalar_lea.vmem [#allocation8], %s2212
        %s2214 = sand.u32 %s255, 1
        %s2215 = scalar_lea.sflag [#allocation10], %s2214
        %s2216 = sand.u32 %s255, 1
        %s2217 = smul.addr %s2216, 256
        %s2218 = scalar_lea.vmem [#allocation9], %s2217
        // Predicated region
        $region65: #{tpu_custom_call.1} parent=51 // pred_check
          %p2219 = pneg %p239
        $region66: #{tpu_custom_call.1} parent=51 // pred_check_branch
          %2221 = sbr.rel (%p2219) target = $region68
        $region67: #{tpu_custom_call.1} parent=51 // pred_region
          %s2223 = ssub.s32 2048, 2048
          %2224 = vsyncadd %s2210, %s2223
          %s2225 = smul.addr %s33, 16
          %s2226 = smul.addr %s2225, 128
          %s2227 = scalar_lea.hbm %s8, %s2226
          %s2228 = sshll.u32 %s2213, 4
          %s2229 = int_to_ptr.vmem [resolvable:$true] %s2228
          %2234 = dma.vmem_to_hbm [thread:$0]  %s2229, 2048, %s2227, %s2210, 128, 128, 8
        $region68: #{tpu_custom_call.1} parent=51 // pred_fallthru
          _
        // Predicated region
        $region69: #{tpu_custom_call.1} parent=51 // pred_check
          %p2235 = pneg %p265
        $region70: #{tpu_custom_call.1} parent=51 // pred_check_branch
          %2237 = sbr.rel (%p2235) target = $region72
        $region71: #{tpu_custom_call.1} parent=51 // pred_region
          %s2239 = ssub.s32 4096, 4096
          %2240 = vsyncadd %s2215, %s2239
          %s2241 = smul.addr %s33, 32
          %s2242 = smul.addr %s2241, 128
          %s2243 = scalar_lea.hbm %s9, %s2242
          %s2244 = sshll.u32 %s2218, 4
          %s2245 = int_to_ptr.vmem [resolvable:$true] %s2244
          %2250 = dma.vmem_to_hbm [thread:$0]  %s2245, 4096, %s2243, %s2215, 128, 128, 8
        $region72: #{tpu_custom_call.1} parent=51 // pred_fallthru
          _
      $region52: #{tpu_custom_call.1} parent=5 // pred_fallthru
        _
      %p2251 = scmp.le.s32.totalorder 2, %s28
      // Predicated region
      $region73: #{tpu_custom_call.1} parent=5 // pred_check
        %p2252 = pneg %p2251
      $region74: #{tpu_custom_call.1} parent=5 // pred_check_branch
        %2254 = sbr.rel (%p2252) target = $region76
      $region75: #{tpu_custom_call.1} parent=5 // pred_region
        %s2255 = ssub.s32 %s28, 2
        // Predicated region
        $region77: #{tpu_custom_call.1} parent=75 // pred_check
          %p2256 = pneg %p245
        $region78: #{tpu_custom_call.1} parent=75 // pred_check_branch
          %2258 = sbr.rel (%p2256) target = $region80
        $region79: #{tpu_custom_call.1} parent=75 // pred_region
          %s2259 = sand.u32 %s230, 1
          %s2260 = scalar_lea.sflag [#allocation4], %s2259
          %s2261 = sand.u32 %s230, 1
          %s2262 = smul.addr %s2261, 128
          %s2263 = scalar_lea.vmem [#allocation8], %s2262
          %2264 = dma.done %s2260, 2048
        $region80: #{tpu_custom_call.1} parent=75 // pred_fallthru
          _
        // Predicated region
        $region81: #{tpu_custom_call.1} parent=75 // pred_check
          %p2265 = pneg %p271
        $region82: #{tpu_custom_call.1} parent=75 // pred_check_branch
          %2267 = sbr.rel (%p2265) target = $region84
        $region83: #{tpu_custom_call.1} parent=75 // pred_region
          %s2268 = sand.u32 %s256, 1
          %s2269 = scalar_lea.sflag [#allocation10], %s2268
          %s2270 = sand.u32 %s256, 1
          %s2271 = smul.addr %s2270, 256
          %s2272 = scalar_lea.vmem [#allocation9], %s2271
          %2273 = dma.done %s2269, 4096
        $region84: #{tpu_custom_call.1} parent=75 // pred_fallthru
          _
      $region76: #{tpu_custom_call.1} parent=5 // pred_fallthru
        _
    $region6: #{tpu_custom_call.1} parent=1 // loop_footer
      %s32 = sadd.s32 1, %s28
    $region7: #{tpu_custom_call.1} parent=1 // loop_footer_branch
      %27 = sbr.rel target = $region3
    $region8: #{tpu_custom_call.1} parent=1 // loop_exit
      _
    %2274 = vsyncpa [#allocation3], 1
    %s2275 = scalar_lea.sflag [#allocation3], 1
    %2276 = vsyncpa %s2275, 1
    %2277 = vsyncpa [#allocation6], 1
    %s2278 = scalar_lea.sflag [#allocation6], 1
    %2279 = vsyncpa %s2278, 1
    %2280 = vsyncpa [#allocation4], 1
    %s2281 = scalar_lea.sflag [#allocation4], 1
    %2282 = vsyncpa %s2281, 1
    %2283 = vsyncpa [#allocation10], 1
    %s2284 = scalar_lea.sflag [#allocation10], 1
    %2285 = vsyncpa %s2284, 1

</llo_original>
